<compile_context>
chip_gen: v6e
topology: v6e:2x2x1
jax: 0.10.0
libtpu: 0.0.40
codegen_flags: <defaults>
</compile_context>

<pallas_src>
import functools

import jax
import jax.numpy as jnp
from jax import lax
from jax.experimental import pallas as pl
from jax.experimental.pallas import tpu as pltpu


def _linear_attention_kernel(x_ref, wqkv_ref, wout_ref, bout_ref, o_ref,
                             out_scratch, *, heads, dim_head):
    # x_ref:    (1, C, N)       one image, channels-first, N = H*W (lane axis)
    # wqkv_ref: (3*hidden, C)   to_qkv 1x1-conv weight (no bias)
    # wout_ref: (dim, hidden)   to_out 1x1-conv weight
    # bout_ref: (dim, 1)        to_out bias (broadcast over lanes)
    # o_ref:    (1, dim, N)
    # out_scratch: (hidden, N) f32 VMEM scratch holding all head outputs
    x = x_ref[0]                                   # (C, N)
    hidden = heads * dim_head

    for j in range(heads):                         # heads is small & static
        wq = wqkv_ref[pl.ds(0 * hidden + j * dim_head, dim_head), :]   # (d, C)
        wk = wqkv_ref[pl.ds(1 * hidden + j * dim_head, dim_head), :]
        wv = wqkv_ref[pl.ds(2 * hidden + j * dim_head, dim_head), :]

        q = jnp.dot(wq, x, preferred_element_type=jnp.float32)         # (d, N)
        k = jnp.dot(wk, x, preferred_element_type=jnp.float32)         # (d, N)
        v = jnp.dot(wv, x, preferred_element_type=jnp.float32)         # (d, N)

        # softmax over the spatial (lane) axis
        k_max = jnp.max(k, axis=-1, keepdims=True)
        k_exp = jnp.exp(k - k_max)
        k_sm = k_exp / jnp.sum(k_exp, axis=-1, keepdims=True)

        # context[d, e] = sum_n k_sm[d, n] * v[e, n]        -> (d, d)
        context = lax.dot_general(k_sm, v, (((1,), (1,)), ((), ())),
                                  preferred_element_type=jnp.float32)
        # out_head[e, n] = sum_d context[d, e] * q[d, n]    -> (d, N)
        out_head = lax.dot_general(context, q, (((0,), (0,)), ((), ())),
                                   preferred_element_type=jnp.float32)

        # sublane-aligned (multiple of dim_head >= 8) store of this head
        out_scratch[pl.ds(j * dim_head, dim_head), :] = out_head

    # to_out 1x1 conv: (dim, hidden) @ (hidden, N) + bias
    y = jnp.dot(wout_ref[...], out_scratch[...],
                preferred_element_type=jnp.float32)                      # (dim, N)
    o_ref[0] = (y + bout_ref[...]).astype(o_ref.dtype)


def linear_attention(x_nchw, w_qkv, w_out, b_out, *, heads=4, dim_head=32):
    """LinearAttention forward.

    x_nchw : (B, C, H, W) float32
    w_qkv  : (3*heads*dim_head, C, 1, 1)   PyTorch Conv2d weight (to_qkv, no bias)
    w_out  : (C, heads*dim_head, 1, 1)     PyTorch Conv2d weight (to_out)
    b_out  : (C,)                          to_out bias
    """
    B, C, H, W = x_nchw.shape
    N = H * W
    hidden = heads * dim_head

    x_flat = x_nchw.reshape(B, C, N)          # pure reshape, no transpose
    wqkv = w_qkv[:, :, 0, 0]                  # (3*hidden, C)
    wout = w_out[:, :, 0, 0]                  # (dim_out, hidden)
    dim_out = wout.shape[0]
    bout = b_out.reshape(dim_out, 1)          # (dim_out, 1)

    kernel = functools.partial(_linear_attention_kernel,
                               heads=heads, dim_head=dim_head)

    out_flat = pl.pallas_call(
        kernel,
        out_shape=jax.ShapeDtypeStruct((B, dim_out, N), x_nchw.dtype),
        grid_spec=pltpu.PrefetchScalarGridSpec(
            num_scalar_prefetch=0,
            grid=(B,),
            in_specs=[
                pl.BlockSpec((1, C, N), lambda b: (b, 0, 0)),          # x (per image)
                pl.BlockSpec((3 * hidden, C), lambda b: (0, 0)),       # resident
                pl.BlockSpec((dim_out, hidden), lambda b: (0, 0)),     # resident
                pl.BlockSpec((dim_out, 1), lambda b: (0, 0)),          # resident
            ],
            out_specs=pl.BlockSpec((1, dim_out, N), lambda b: (b, 0, 0)),
            scratch_shapes=[pltpu.VMEM((hidden, N), jnp.float32)],
        ),
        compiler_params=pltpu.CompilerParams(
            dimension_semantics=("parallel",),          # independent per image
            vmem_limit_bytes=32 * 1024 * 1024,          # portable across v5e/v6e/v7x
        ),
    )(x_flat, wqkv, wout, bout)

    return out_flat.reshape(B, dim_out, H, W)


def _linear_attention_ref(x, w_qkv, w_out, b_out, heads, dim_head):
    """Pure-JAX reference mirroring the PyTorch module."""
    b, c, h, w = x.shape
    n = h * w
    hidden = heads * dim_head
    x_flat = x.reshape(b, c, n)
    qkv = jnp.einsum("oc,bcn->bon", w_qkv[:, :, 0, 0], x_flat)
    qkv = qkv.reshape(b, 3, heads, dim_head, n)
    q, k, v = qkv[:, 0], qkv[:, 1], qkv[:, 2]
    k = jax.nn.softmax(k, axis=-1)
    context = jnp.einsum("bhdn,bhen->bhde", k, v)
    out = jnp.einsum("bhde,bhdn->bhen", context, q)
    out = out.reshape(b, hidden, n)
    out = jnp.einsum("oc,bcn->bon", w_out[:, :, 0, 0], out) + b_out[None, :, None]
    return out.reshape(b, -1, h, w)


if __name__ == "__main__":
    key = jax.random.PRNGKey(0)
    kx, kqkv, kw, kb = jax.random.split(key, 4)

    B, dim, H, W = 2, 8, 16, 16          # small test shapes; N = H*W = 256 lanes
    heads, dim_head = 4, 32              # module defaults -> hidden = 128
    hidden = heads * dim_head

    x = jax.random.normal(kx, (B, dim, H, W), dtype=jnp.float32)
    w_qkv = jax.random.normal(kqkv, (hidden * 3, dim, 1, 1), dtype=jnp.float32) * 0.1
    w_out = jax.random.normal(kw, (dim, hidden, 1, 1), dtype=jnp.float32) * 0.1
    b_out = jax.random.normal(kb, (dim,), dtype=jnp.float32) * 0.1

    out = linear_attention(x, w_qkv, w_out, b_out, heads=heads, dim_head=dim_head)
    jax.block_until_ready(out)

    ref = _linear_attention_ref(x, w_qkv, w_out, b_out, heads, dim_head)
    assert out.shape == ref.shape and out.dtype == x.dtype
    assert jnp.allclose(out, ref, atol=1e-4, rtol=1e-4), float(jnp.max(jnp.abs(out - ref)))

    print("KERNEL_OK")
</pallas_src>

<mosaic_0001>
module attributes {stable_mosaic.version = 11 : i64} {
  func.func @_linear_attention_kernel(%arg0: i32, %arg1: memref<1x8x256xf32, #tpu.memory_space<vmem>>, %arg2: memref<384x8xf32, #tpu.memory_space<vmem>>, %arg3: memref<8x128xf32, #tpu.memory_space<vmem>>, %arg4: memref<8x1xf32, #tpu.memory_space<vmem>>, %arg5: memref<1x8x256xf32, #tpu.memory_space<vmem>>, %arg6: memref<128x256xf32, #tpu.memory_space<vmem>>) attributes {dimension_semantics = [#tpu.dimension_semantics<parallel>], iteration_bounds = array<i64: 2>, scalar_prefetch = 0 : i64, scratch_operands = 1 : i64, tpu.core_type = #tpu.core_type<tc>, window_params = [{transform_indices = @transform_0, window_bounds = array<i64: 1, 8, 256>}, {pipeline_mode = #tpu.pipeline_mode<synchronous>, transform_indices = @transform_1, window_bounds = array<i64: 384, 8>}, {pipeline_mode = #tpu.pipeline_mode<synchronous>, transform_indices = @transform_2, window_bounds = array<i64: 8, 128>}, {pipeline_mode = #tpu.pipeline_mode<synchronous>, transform_indices = @transform_3, window_bounds = array<i64: 8, 1>}, {transform_indices = @transform_4, window_bounds = array<i64: 1, 8, 256>}]} {
    %c0 = arith.constant 0 : index
    %c0_0 = arith.constant 0 : index
    %c0_1 = arith.constant 0 : index
    %0 = vector.load %arg1[%c0, %c0_0, %c0_1] : memref<1x8x256xf32, #tpu.memory_space<vmem>>, vector<1x8x256xf32>
    %1 = vector.shape_cast %0 : vector<1x8x256xf32> to vector<8x256xf32>
    %c0_2 = arith.constant 0 : index
    %c0_3 = arith.constant 0 : index
    %2 = vector.load %arg2[%c0_2, %c0_3] : memref<384x8xf32, #tpu.memory_space<vmem>>, vector<32x8xf32>
    %c128 = arith.constant 128 : index
    %c0_4 = arith.constant 0 : index
    %3 = vector.load %arg2[%c128, %c0_4] : memref<384x8xf32, #tpu.memory_space<vmem>>, vector<32x8xf32>
    %c256 = arith.constant 256 : index
    %c0_5 = arith.constant 0 : index
    %4 = vector.load %arg2[%c256, %c0_5] : memref<384x8xf32, #tpu.memory_space<vmem>>, vector<32x8xf32>
    %cst = arith.constant dense<0.000000e+00> : vector<32x256xf32>
    %5 = tpu.matmul %2, %1, %cst {dimension_numbers = #tpu.dot_dimension_numbers<[1], [0], [0], [1], [0, 0, 1, 1], [], []>} : vector<32x8xf32>, vector<8x256xf32>, vector<32x256xf32> -> vector<32x256xf32>
    %cst_6 = arith.constant dense<0.000000e+00> : vector<32x256xf32>
    %6 = tpu.matmul %3, %1, %cst_6 {dimension_numbers = #tpu.dot_dimension_numbers<[1], [0], [0], [1], [0, 0, 1, 1], [], []>} : vector<32x8xf32>, vector<8x256xf32>, vector<32x256xf32> -> vector<32x256xf32>
    %cst_7 = arith.constant dense<0.000000e+00> : vector<32x256xf32>
    %7 = tpu.matmul %4, %1, %cst_7 {dimension_numbers = #tpu.dot_dimension_numbers<[1], [0], [0], [1], [0, 0, 1, 1], [], []>} : vector<32x8xf32>, vector<8x256xf32>, vector<32x256xf32> -> vector<32x256xf32>
    %cst_8 = arith.constant dense<0xFF800000> : vector<32xf32>
    %8 = vector.multi_reduction <maximumf>, %6, %cst_8 [1] : vector<32x256xf32> to vector<32xf32>
    %9 = vector.shape_cast %8 : vector<32xf32> to vector<32x1xf32>
    %10 = vector.broadcast %9 : vector<32x1xf32> to vector<32x256xf32>
    %11 = arith.subf %6, %10 : vector<32x256xf32>
    %12 = math.exp %11 : vector<32x256xf32>
    %cst_9 = arith.constant dense<0.000000e+00> : vector<32xf32>
    %13 = vector.multi_reduction <add>, %12, %cst_9 [1] : vector<32x256xf32> to vector<32xf32>
    %14 = vector.shape_cast %13 : vector<32xf32> to vector<32x1xf32>
    %15 = vector.broadcast %14 : vector<32x1xf32> to vector<32x256xf32>
    %16 = arith.divf %12, %15 : vector<32x256xf32>
    %cst_10 = arith.constant dense<0.000000e+00> : vector<32x32xf32>
    %17 = tpu.matmul %16, %7, %cst_10 {dimension_numbers = #tpu.dot_dimension_numbers<[1], [1], [0], [0], [0, 0, 1, 0], [], []>} : vector<32x256xf32>, vector<32x256xf32>, vector<32x32xf32> -> vector<32x32xf32>
    %cst_11 = arith.constant dense<0.000000e+00> : vector<32x256xf32>
    %18 = tpu.matmul %17, %5, %cst_11 {dimension_numbers = #tpu.dot_dimension_numbers<[0], [0], [1], [1], [0, 1, 1, 1], [], []>} : vector<32x32xf32>, vector<32x256xf32>, vector<32x256xf32> -> vector<32x256xf32>
    %c0_12 = arith.constant 0 : index
    %c0_13 = arith.constant 0 : index
    %19 = vector.load %arg6[%c0_12, %c0_13] : memref<128x256xf32, #tpu.memory_space<vmem>>, vector<32x256xf32>
    tpu.vector_store %arg6[%c0_12, %c0_13], %18 {strides = array<i32>} : memref<128x256xf32, #tpu.memory_space<vmem>>, vector<32x256xf32>,
    %c32 = arith.constant 32 : index
    %c0_14 = arith.constant 0 : index
    %20 = vector.load %arg2[%c32, %c0_14] : memref<384x8xf32, #tpu.memory_space<vmem>>, vector<32x8xf32>
    %c160 = arith.constant 160 : index
    %c0_15 = arith.constant 0 : index
    %21 = vector.load %arg2[%c160, %c0_15] : memref<384x8xf32, #tpu.memory_space<vmem>>, vector<32x8xf32>
    %c288 = arith.constant 288 : index
    %c0_16 = arith.constant 0 : index
    %22 = vector.load %arg2[%c288, %c0_16] : memref<384x8xf32, #tpu.memory_space<vmem>>, vector<32x8xf32>
    %cst_17 = arith.constant dense<0.000000e+00> : vector<32x256xf32>
    %23 = tpu.matmul %20, %1, %cst_17 {dimension_numbers = #tpu.dot_dimension_numbers<[1], [0], [0], [1], [0, 0, 1, 1], [], []>} : vector<32x8xf32>, vector<8x256xf32>, vector<32x256xf32> -> vector<32x256xf32>
    %cst_18 = arith.constant dense<0.000000e+00> : vector<32x256xf32>
    %24 = tpu.matmul %21, %1, %cst_18 {dimension_numbers = #tpu.dot_dimension_numbers<[1], [0], [0], [1], [0, 0, 1, 1], [], []>} : vector<32x8xf32>, vector<8x256xf32>, vector<32x256xf32> -> vector<32x256xf32>
    %cst_19 = arith.constant dense<0.000000e+00> : vector<32x256xf32>
    %25 = tpu.matmul %22, %1, %cst_19 {dimension_numbers = #tpu.dot_dimension_numbers<[1], [0], [0], [1], [0, 0, 1, 1], [], []>} : vector<32x8xf32>, vector<8x256xf32>, vector<32x256xf32> -> vector<32x256xf32>
    %cst_20 = arith.constant dense<0xFF800000> : vector<32xf32>
    %26 = vector.multi_reduction <maximumf>, %24, %cst_20 [1] : vector<32x256xf32> to vector<32xf32>
    %27 = vector.shape_cast %26 : vector<32xf32> to vector<32x1xf32>
    %28 = vector.broadcast %27 : vector<32x1xf32> to vector<32x256xf32>
    %29 = arith.subf %24, %28 : vector<32x256xf32>
    %30 = math.exp %29 : vector<32x256xf32>
    %cst_21 = arith.constant dense<0.000000e+00> : vector<32xf32>
    %31 = vector.multi_reduction <add>, %30, %cst_21 [1] : vector<32x256xf32> to vector<32xf32>
    %32 = vector.shape_cast %31 : vector<32xf32> to vector<32x1xf32>
    %33 = vector.broadcast %32 : vector<32x1xf32> to vector<32x256xf32>
    %34 = arith.divf %30, %33 : vector<32x256xf32>
    %cst_22 = arith.constant dense<0.000000e+00> : vector<32x32xf32>
    %35 = tpu.matmul %34, %25, %cst_22 {dimension_numbers = #tpu.dot_dimension_numbers<[1], [1], [0], [0], [0, 0, 1, 0], [], []>} : vector<32x256xf32>, vector<32x256xf32>, vector<32x32xf32> -> vector<32x32xf32>
    %cst_23 = arith.constant dense<0.000000e+00> : vector<32x256xf32>
    %36 = tpu.matmul %35, %23, %cst_23 {dimension_numbers = #tpu.dot_dimension_numbers<[0], [0], [1], [1], [0, 1, 1, 1], [], []>} : vector<32x32xf32>, vector<32x256xf32>, vector<32x256xf32> -> vector<32x256xf32>
    %c32_24 = arith.constant 32 : index
    %c0_25 = arith.constant 0 : index
    %37 = vector.load %arg6[%c32_24, %c0_25] : memref<128x256xf32, #tpu.memory_space<vmem>>, vector<32x256xf32>
    tpu.vector_store %arg6[%c32_24, %c0_25], %36 {strides = array<i32>} : memref<128x256xf32, #tpu.memory_space<vmem>>, vector<32x256xf32>,
    %c64 = arith.constant 64 : index
    %c0_26 = arith.constant 0 : index
    %38 = vector.load %arg2[%c64, %c0_26] : memref<384x8xf32, #tpu.memory_space<vmem>>, vector<32x8xf32>
    %c192 = arith.constant 192 : index
    %c0_27 = arith.constant 0 : index
    %39 = vector.load %arg2[%c192, %c0_27] : memref<384x8xf32, #tpu.memory_space<vmem>>, vector<32x8xf32>
    %c320 = arith.constant 320 : index
    %c0_28 = arith.constant 0 : index
    %40 = vector.load %arg2[%c320, %c0_28] : memref<384x8xf32, #tpu.memory_space<vmem>>, vector<32x8xf32>
    %cst_29 = arith.constant dense<0.000000e+00> : vector<32x256xf32>
    %41 = tpu.matmul %38, %1, %cst_29 {dimension_numbers = #tpu.dot_dimension_numbers<[1], [0], [0], [1], [0, 0, 1, 1], [], []>} : vector<32x8xf32>, vector<8x256xf32>, vector<32x256xf32> -> vector<32x256xf32>
    %cst_30 = arith.constant dense<0.000000e+00> : vector<32x256xf32>
    %42 = tpu.matmul %39, %1, %cst_30 {dimension_numbers = #tpu.dot_dimension_numbers<[1], [0], [0], [1], [0, 0, 1, 1], [], []>} : vector<32x8xf32>, vector<8x256xf32>, vector<32x256xf32> -> vector<32x256xf32>
    %cst_31 = arith.constant dense<0.000000e+00> : vector<32x256xf32>
    %43 = tpu.matmul %40, %1, %cst_31 {dimension_numbers = #tpu.dot_dimension_numbers<[1], [0], [0], [1], [0, 0, 1, 1], [], []>} : vector<32x8xf32>, vector<8x256xf32>, vector<32x256xf32> -> vector<32x256xf32>
    %cst_32 = arith.constant dense<0xFF800000> : vector<32xf32>
    %44 = vector.multi_reduction <maximumf>, %42, %cst_32 [1] : vector<32x256xf32> to vector<32xf32>
    %45 = vector.shape_cast %44 : vector<32xf32> to vector<32x1xf32>
    %46 = vector.broadcast %45 : vector<32x1xf32> to vector<32x256xf32>
    %47 = arith.subf %42, %46 : vector<32x256xf32>
    %48 = math.exp %47 : vector<32x256xf32>
    %cst_33 = arith.constant dense<0.000000e+00> : vector<32xf32>
    %49 = vector.multi_reduction <add>, %48, %cst_33 [1] : vector<32x256xf32> to vector<32xf32>
    %50 = vector.shape_cast %49 : vector<32xf32> to vector<32x1xf32>
    %51 = vector.broadcast %50 : vector<32x1xf32> to vector<32x256xf32>
    %52 = arith.divf %48, %51 : vector<32x256xf32>
    %cst_34 = arith.constant dense<0.000000e+00> : vector<32x32xf32>
    %53 = tpu.matmul %52, %43, %cst_34 {dimension_numbers = #tpu.dot_dimension_numbers<[1], [1], [0], [0], [0, 0, 1, 0], [], []>} : vector<32x256xf32>, vector<32x256xf32>, vector<32x32xf32> -> vector<32x32xf32>
    %cst_35 = arith.constant dense<0.000000e+00> : vector<32x256xf32>
    %54 = tpu.matmul %53, %41, %cst_35 {dimension_numbers = #tpu.dot_dimension_numbers<[0], [0], [1], [1], [0, 1, 1, 1], [], []>} : vector<32x32xf32>, vector<32x256xf32>, vector<32x256xf32> -> vector<32x256xf32>
    %c64_36 = arith.constant 64 : index
    %c0_37 = arith.constant 0 : index
    %55 = vector.load %arg6[%c64_36, %c0_37] : memref<128x256xf32, #tpu.memory_space<vmem>>, vector<32x256xf32>
    tpu.vector_store %arg6[%c64_36, %c0_37], %54 {strides = array<i32>} : memref<128x256xf32, #tpu.memory_space<vmem>>, vector<32x256xf32>,
    %c96 = arith.constant 96 : index
    %c0_38 = arith.constant 0 : index
    %56 = vector.load %arg2[%c96, %c0_38] : memref<384x8xf32, #tpu.memory_space<vmem>>, vector<32x8xf32>
    %c224 = arith.constant 224 : index
    %c0_39 = arith.constant 0 : index
    %57 = vector.load %arg2[%c224, %c0_39] : memref<384x8xf32, #tpu.memory_space<vmem>>, vector<32x8xf32>
    %c352 = arith.constant 352 : index
    %c0_40 = arith.constant 0 : index
    %58 = vector.load %arg2[%c352, %c0_40] : memref<384x8xf32, #tpu.memory_space<vmem>>, vector<32x8xf32>
    %cst_41 = arith.constant dense<0.000000e+00> : vector<32x256xf32>
    %59 = tpu.matmul %56, %1, %cst_41 {dimension_numbers = #tpu.dot_dimension_numbers<[1], [0], [0], [1], [0, 0, 1, 1], [], []>} : vector<32x8xf32>, vector<8x256xf32>, vector<32x256xf32> -> vector<32x256xf32>
    %cst_42 = arith.constant dense<0.000000e+00> : vector<32x256xf32>
    %60 = tpu.matmul %57, %1, %cst_42 {dimension_numbers = #tpu.dot_dimension_numbers<[1], [0], [0], [1], [0, 0, 1, 1], [], []>} : vector<32x8xf32>, vector<8x256xf32>, vector<32x256xf32> -> vector<32x256xf32>
    %cst_43 = arith.constant dense<0.000000e+00> : vector<32x256xf32>
    %61 = tpu.matmul %58, %1, %cst_43 {dimension_numbers = #tpu.dot_dimension_numbers<[1], [0], [0], [1], [0, 0, 1, 1], [], []>} : vector<32x8xf32>, vector<8x256xf32>, vector<32x256xf32> -> vector<32x256xf32>
    %cst_44 = arith.constant dense<0xFF800000> : vector<32xf32>
    %62 = vector.multi_reduction <maximumf>, %60, %cst_44 [1] : vector<32x256xf32> to vector<32xf32>
    %63 = vector.shape_cast %62 : vector<32xf32> to vector<32x1xf32>
    %64 = vector.broadcast %63 : vector<32x1xf32> to vector<32x256xf32>
    %65 = arith.subf %60, %64 : vector<32x256xf32>
    %66 = math.exp %65 : vector<32x256xf32>
    %cst_45 = arith.constant dense<0.000000e+00> : vector<32xf32>
    %67 = vector.multi_reduction <add>, %66, %cst_45 [1] : vector<32x256xf32> to vector<32xf32>
    %68 = vector.shape_cast %67 : vector<32xf32> to vector<32x1xf32>
    %69 = vector.broadcast %68 : vector<32x1xf32> to vector<32x256xf32>
    %70 = arith.divf %66, %69 : vector<32x256xf32>
    %cst_46 = arith.constant dense<0.000000e+00> : vector<32x32xf32>
    %71 = tpu.matmul %70, %61, %cst_46 {dimension_numbers = #tpu.dot_dimension_numbers<[1], [1], [0], [0], [0, 0, 1, 0], [], []>} : vector<32x256xf32>, vector<32x256xf32>, vector<32x32xf32> -> vector<32x32xf32>
    %cst_47 = arith.constant dense<0.000000e+00> : vector<32x256xf32>
    %72 = tpu.matmul %71, %59, %cst_47 {dimension_numbers = #tpu.dot_dimension_numbers<[0], [0], [1], [1], [0, 1, 1, 1], [], []>} : vector<32x32xf32>, vector<32x256xf32>, vector<32x256xf32> -> vector<32x256xf32>
    %c96_48 = arith.constant 96 : index
    %c0_49 = arith.constant 0 : index
    %73 = vector.load %arg6[%c96_48, %c0_49] : memref<128x256xf32, #tpu.memory_space<vmem>>, vector<32x256xf32>
    tpu.vector_store %arg6[%c96_48, %c0_49], %72 {strides = array<i32>} : memref<128x256xf32, #tpu.memory_space<vmem>>, vector<32x256xf32>,
    %c0_50 = arith.constant 0 : index
    %c0_51 = arith.constant 0 : index
    %74 = vector.load %arg3[%c0_50, %c0_51] : memref<8x128xf32, #tpu.memory_space<vmem>>, vector<8x128xf32>
    %c0_52 = arith.constant 0 : index
    %c0_53 = arith.constant 0 : index
    %75 = vector.load %arg6[%c0_52, %c0_53] : memref<128x256xf32, #tpu.memory_space<vmem>>, vector<128x256xf32>
    %cst_54 = arith.constant dense<0.000000e+00> : vector<8x256xf32>
    %76 = tpu.matmul %74, %75, %cst_54 {dimension_numbers = #tpu.dot_dimension_numbers<[1], [0], [0], [1], [0, 0, 1, 1], [], []>} : vector<8x128xf32>, vector<128x256xf32>, vector<8x256xf32> -> vector<8x256xf32>
    %c0_55 = arith.constant 0 : index
    %c0_56 = arith.constant 0 : index
    %77 = vector.load %arg4[%c0_55, %c0_56] : memref<8x1xf32, #tpu.memory_space<vmem>>, vector<8x1xf32>
    %78 = vector.broadcast %77 : vector<8x1xf32> to vector<8x256xf32>
    %79 = arith.addf %76, %78 : vector<8x256xf32>
    %c0_57 = arith.constant 0 : index
    %c0_58 = arith.constant 0 : index
    %c0_59 = arith.constant 0 : index
    %80 = vector.load %arg5[%c0_57, %c0_58, %c0_59] : memref<1x8x256xf32, #tpu.memory_space<vmem>>, vector<1x8x256xf32>
    %81 = vector.shape_cast %80 : vector<1x8x256xf32> to vector<8x256xf32>
    %82 = vector.shape_cast %79 : vector<8x256xf32> to vector<1x8x256xf32>
    tpu.vector_store %arg5[%c0_57, %c0_58, %c0_59], %82 {strides = array<i32>} : memref<1x8x256xf32, #tpu.memory_space<vmem>>, vector<1x8x256xf32>,
    return
  }
  func.func @transform_0(%arg0: i32) -> (i32, i32, i32) {
    %c0_i32 = arith.constant 0 : i32
    %c0_i32_0 = arith.constant 0 : i32
    %c0_i32_1 = arith.constant 0 : i32
    return %arg0, %c0_i32, %c0_i32_0 : i32, i32, i32
  }
  func.func @transform_1(%arg0: i32) -> (i32, i32) {
    %c0_i32 = arith.constant 0 : i32
    %c0_i32_0 = arith.constant 0 : i32
    %c0_i32_1 = arith.constant 0 : i32
    return %c0_i32, %c0_i32_0 : i32, i32
  }
  func.func @transform_2(%arg0: i32) -> (i32, i32) {
    %c0_i32 = arith.constant 0 : i32
    %c0_i32_0 = arith.constant 0 : i32
    %c0_i32_1 = arith.constant 0 : i32
    return %c0_i32, %c0_i32_0 : i32, i32
  }
  func.func @transform_3(%arg0: i32) -> (i32, i32) {
    %c0_i32 = arith.constant 0 : i32
    %c0_i32_0 = arith.constant 0 : i32
    %c0_i32_1 = arith.constant 0 : i32
    return %c0_i32, %c0_i32_0 : i32, i32
  }
  func.func @transform_4(%arg0: i32) -> (i32, i32, i32) {
    %c0_i32 = arith.constant 0 : i32
    %c0_i32_0 = arith.constant 0 : i32
    %c0_i32_1 = arith.constant 0 : i32
    return %arg0, %c0_i32, %c0_i32_0 : i32, i32, i32
  }
}

</mosaic_0001>

<llo_original>
// kernel: tpu_custom_call.1
$region0: #{tpu_custom_call.1}
  #allocation0 [shape = 'u32[]', space=smem, size = 0x4, offset = 0x4, fixed_abs, tag = 'smem constant byte address 0x4 - core index']
  #allocation1 [shape = 'u32[144,128]{1,0:T(1,128)}', space=vmem, size = 0x12000, scoped, tag = 'internal scratch']
  #allocation2 [shape = 'f32[128,256]{1,0:T(8,128)}', space=vmem, size = 0x20000, scoped, tag = 'scratch operand']
  %s0 = inlined_call_operand.vmem [shape: f32[2,8,256], index: 0, kind: input, shape index: {}]
  %s1 = inlined_call_operand.vmem [shape: f32[384,8], index: 1, kind: input, shape index: {}]
  %s2 = inlined_call_operand.vmem [shape: f32[8,128], index: 2, kind: input, shape index: {}]
  %s3 = inlined_call_operand.vmem [shape: f32[8,1], index: 3, kind: input, shape index: {}]
  %s4 = inlined_call_operand.hbm [shape: f32[2,8,256], index: 4, kind: output, shape index: {}]
  %s5 = sld [smem:[#allocation0]]
  $region49: #{tpu_custom_call.1} parent=0
    _
  %s7 = ssub.s32 1, %s5
  %s8 = scalar_select 0, %s7, %s5
  $region1: #{tpu_custom_call.1} parent=0
    #allocation3 [shape = 'u8[16384]{0}', space=vmem, size = 0x4000, scoped, tag = 'output window, operand 0']
    #allocation4 [shape = 's32[2]{0}', space=sflag, size = 0x8, scoped, tag = 'scoped memory for tpu_custom_call.1']
    %9 = vsyncpa [#allocation4], 0
    %s10 = scalar_lea.sflag [#allocation4], 1
    %11 = vsyncpa %s10, 0
    loop: start=0, step=1, limit=4
    $region2: #{tpu_custom_call.1} parent=1 // loop_pre_header
      _
    $region3: #{tpu_custom_call.1} parent=1 // loop_header
      %s13 = sphi 0, %s17
      %p14 = scmp.ge.s32.totalorder %s13, 4
      %s23 = sphi 0, %s25
      %s26 = sphi 0, %s23
      %s27 = sphi 0, %s26
      %s43 = sphi 0, %s27
      %s47 = sphi 0, %s47
      %s49 = sphi 0, %s47
      %s50 = sphi 0, %s49
      %s64 = sphi 0, %s50
      %s68 = sphi 0, %s68
      %s70 = sphi 0, %s68
      %s71 = sphi 0, %s70
      %s85 = sphi 0, %s71
      %s89 = sphi 0, %s89
      %s91 = sphi 0, %s89
      %s92 = sphi 0, %s91
      %s106 = sphi 0, %s92
      %s112 = sphi 0, %s114
      %s115 = sphi 0, %s112
      %s116 = sphi 0, %s115
      %s132 = sphi 0, %s116
    $region4: #{tpu_custom_call.1} parent=1 // loop_header_branch
      %16 = sbr.rel (%p14) target = $region8
    $region5: #{tpu_custom_call.1} parent=1 // loop_body
      %s18 = ssub.s32 %s13, 1
      %s19 = ssub.s32 %s13, 2
      %s20 = sadd.s32 %s13, 1
      %s21 = ssub.s32 %s13, %s20
      %p22 = scmp.eq.s32.totalorder %s21, 0
      %s24 = sadd.s32 %s23, 1
      %s25 = scalar_select %p22, %s23, %s24
      %p28 = pneg %p22
      %p29 = scmp.eq.s32.totalorder %s13, 1
      %p30 = por %p28, %p29
      %p31 = scmp.ne.s32.totalorder %s23, %s26
      %p32 = scmp.eq.s32.totalorder %s13, 0
      %p33 = por %p31, %p32
      %p34 = scmp.ne.s32.totalorder %s23, %s26
      %p35 = scmp.eq.s32.totalorder %s18, 1
      %p36 = por %p34, %p35
      %p37 = scmp.ne.s32.totalorder %s26, %s27
      %p38 = scmp.eq.s32.totalorder %s18, 0
      %p39 = por %p37, %p38
      %p40 = scmp.ne.s32.totalorder %s26, %s27
      %p41 = scmp.eq.s32.totalorder %s19, 1
      %p42 = por %p40, %p41
      %p44 = scmp.ne.s32.totalorder %s27, %s43
      %p45 = scmp.eq.s32.totalorder %s19, 0
      %p46 = por %p44, %p45
      %s48 = sadd.s32 %s47, 1
      %p51 = scmp.eq.s32.totalorder %s13, 1
      %p52 = scmp.ne.s32.totalorder %s47, %s49
      %p53 = scmp.eq.s32.totalorder %s13, 0
      %p54 = por %p52, %p53
      %p55 = scmp.ne.s32.totalorder %s47, %s49
      %p56 = scmp.eq.s32.totalorder %s18, 1
      %p57 = por %p55, %p56
      %p58 = scmp.ne.s32.totalorder %s49, %s50
      %p59 = scmp.eq.s32.totalorder %s18, 0
      %p60 = por %p58, %p59
      %p61 = scmp.ne.s32.totalorder %s49, %s50
      %p62 = scmp.eq.s32.totalorder %s19, 1
      %p63 = por %p61, %p62
      %p65 = scmp.ne.s32.totalorder %s50, %s64
      %p66 = scmp.eq.s32.totalorder %s19, 0
      %p67 = por %p65, %p66
      %s69 = sadd.s32 %s68, 1
      %p72 = scmp.eq.s32.totalorder %s13, 1
      %p73 = scmp.ne.s32.totalorder %s68, %s70
      %p74 = scmp.eq.s32.totalorder %s13, 0
      %p75 = por %p73, %p74
      %p76 = scmp.ne.s32.totalorder %s68, %s70
      %p77 = scmp.eq.s32.totalorder %s18, 1
      %p78 = por %p76, %p77
      %p79 = scmp.ne.s32.totalorder %s70, %s71
      %p80 = scmp.eq.s32.totalorder %s18, 0
      %p81 = por %p79, %p80
      %p82 = scmp.ne.s32.totalorder %s70, %s71
      %p83 = scmp.eq.s32.totalorder %s19, 1
      %p84 = por %p82, %p83
      %p86 = scmp.ne.s32.totalorder %s71, %s85
      %p87 = scmp.eq.s32.totalorder %s19, 0
      %p88 = por %p86, %p87
      %s90 = sadd.s32 %s89, 1
      %p93 = scmp.eq.s32.totalorder %s13, 1
      %p94 = scmp.ne.s32.totalorder %s89, %s91
      %p95 = scmp.eq.s32.totalorder %s13, 0
      %p96 = por %p94, %p95
      %p97 = scmp.ne.s32.totalorder %s89, %s91
      %p98 = scmp.eq.s32.totalorder %s18, 1
      %p99 = por %p97, %p98
      %p100 = scmp.ne.s32.totalorder %s91, %s92
      %p101 = scmp.eq.s32.totalorder %s18, 0
      %p102 = por %p100, %p101
      %p103 = scmp.ne.s32.totalorder %s91, %s92
      %p104 = scmp.eq.s32.totalorder %s19, 1
      %p105 = por %p103, %p104
      %p107 = scmp.ne.s32.totalorder %s92, %s106
      %p108 = scmp.eq.s32.totalorder %s19, 0
      %p109 = por %p107, %p108
      %s110 = ssub.s32 %s13, %s20
      %p111 = scmp.eq.s32.totalorder %s110, 0
      %s113 = sadd.s32 %s112, 1
      %s114 = scalar_select %p111, %s112, %s113
      %p117 = pneg %p111
      %p118 = scmp.eq.s32.totalorder %s13, 1
      %p119 = por %p117, %p118
      %p120 = scmp.ne.s32.totalorder %s112, %s115
      %p121 = scmp.eq.s32.totalorder %s13, 0
      %p122 = por %p120, %p121
      %p123 = scmp.ne.s32.totalorder %s112, %s115
      %p124 = scmp.eq.s32.totalorder %s18, 1
      %p125 = por %p123, %p124
      %p126 = scmp.ne.s32.totalorder %s115, %s116
      %p127 = scmp.eq.s32.totalorder %s18, 0
      %p128 = por %p126, %p127
      %p129 = scmp.ne.s32.totalorder %s115, %s116
      %p130 = scmp.eq.s32.totalorder %s19, 1
      %p131 = por %p129, %p130
      %p133 = scmp.ne.s32.totalorder %s116, %s132
      %p134 = scmp.eq.s32.totalorder %s19, 0
      %p135 = por %p133, %p134
      %p136 = scmp.le.s32.totalorder 1, %s13
      %p137 = scmp.lt.s32.totalorder %s13, 3
      %p138 = pnand %p136, %p137
      %p139 = pneg %p138
      // Predicated region
      $region9: #{tpu_custom_call.1} parent=5 // pred_check
        _
      $region10: #{tpu_custom_call.1} parent=5 // pred_check_branch
        %141 = sbr.rel (%p138) target = $region12
      $region11: #{tpu_custom_call.1} parent=5 // pred_region
        %s142 = ssub.s32 %s13, 1
        // Predicated region
        $region13: #{tpu_custom_call.1} parent=11 // pred_check
          %p143 = pneg %p60
        $region14: #{tpu_custom_call.1} parent=11 // pred_check_branch
          %145 = sbr.rel (%p143) target = $region16
        $region15: #{tpu_custom_call.1} parent=11 // pred_region
          _
        $region16: #{tpu_custom_call.1} parent=11 // pred_fallthru
          _
        // Predicated region
        $region17: #{tpu_custom_call.1} parent=11 // pred_check
          %p146 = pneg %p81
        $region18: #{tpu_custom_call.1} parent=11 // pred_check_branch
          %148 = sbr.rel (%p146) target = $region20
        $region19: #{tpu_custom_call.1} parent=11 // pred_region
          _
        $region20: #{tpu_custom_call.1} parent=11 // pred_fallthru
          _
        // Predicated region
        $region21: #{tpu_custom_call.1} parent=11 // pred_check
          %p149 = pneg %p102
        $region22: #{tpu_custom_call.1} parent=11 // pred_check_branch
          %151 = sbr.rel (%p149) target = $region24
        $region23: #{tpu_custom_call.1} parent=11 // pred_region
          _
        $region24: #{tpu_custom_call.1} parent=11 // pred_fallthru
          _
      $region12: #{tpu_custom_call.1} parent=5 // pred_fallthru
        _
      %p152 = scmp.lt.s32.totalorder %s13, 2
      // Predicated region
      $region25: #{tpu_custom_call.1} parent=5 // pred_check
        %p153 = pneg %p152
      $region26: #{tpu_custom_call.1} parent=5 // pred_check_branch
        %155 = sbr.rel (%p153) target = $region28
      $region27: #{tpu_custom_call.1} parent=5 // pred_region
        // Predicated region
        $region29: #{tpu_custom_call.1} parent=27 // pred_check
          %p156 = pneg %p33
        $region30: #{tpu_custom_call.1} parent=27 // pred_check_branch
          %158 = sbr.rel (%p156) target = $region32
        $region31: #{tpu_custom_call.1} parent=27 // pred_region
          %p159 = scmp.lt.s32.totalorder %s13, 1
          %s160 = scalar_select %p159, %s13, 1
          %s161 = smul.addr %s160, 2
          %s162 = smul.addr %s161, 8
          %s163 = scalar_lea.vmem %s0, %s162
        $region32: #{tpu_custom_call.1} parent=27 // pred_fallthru
          _
      $region28: #{tpu_custom_call.1} parent=5 // pred_fallthru
        _
      %p164 = scmp.le.s32.totalorder 1, %s13
      %p165 = scmp.lt.s32.totalorder %s13, 3
      %p166 = pnand %p164, %p165
      %p167 = pneg %p166
      // Predicated region
      $region33: #{tpu_custom_call.1} parent=5 // pred_check
        _
      $region34: #{tpu_custom_call.1} parent=5 // pred_check_branch
        %169 = sbr.rel (%p166) target = $region36
      $region35: #{tpu_custom_call.1} parent=5 // pred_region
        %s170 = ssub.s32 %s13, 1
        %p171 = scmp.lt.s32.totalorder %s18, 1
        %s172 = scalar_select %p171, %s18, 1
        %s173 = smul.addr %s172, 2
        %s174 = smul.addr %s173, 8
        %s175 = scalar_lea.vmem %s0, %s174
        %p176 = pneg %p39
        %p177 = pneg %p36
        %p178 = pneg %p60
        %p179 = pneg %p57
        %p180 = pneg %p81
        %p181 = pneg %p78
        %p182 = pneg %p102
        %p183 = pneg %p99
        %p184 = pneg %p128
        %p185 = pneg %p125
        %s186 = sand.u32 %s115, 1
        %s187 = scalar_lea.sflag [#allocation4], %s186
        %s188 = sand.u32 %s115, 1
        %s189 = smul.addr %s188, 16
        %s190 = scalar_lea.vmem [#allocation3], %s189
        %p191 = scmp.lt.s32.totalorder %s18, 1
        %s192 = scalar_select %p191, %s18, 1
        %s193 = smul.addr %s192, 2
        %s194 = smul.addr %s193, 8
        %s195 = scalar_lea.vmem %s0, %s194
        %v196 = vld [vmem:[%s195] sm:$0xff]
        %v197 = vld [vmem:[%s195 + $0x8] sm:$0xff]
        %v198 = vld [vmem:[%s1] sm:$0xff]
        %v199 = vld [vmem:[%s1 + $0x8] sm:$0xff]
        %v200 = vld [vmem:[%s1 + $0x10] sm:$0xff]
        %v201 = vld [vmem:[%s1 + $0x18] sm:$0xff]
        %v202 = vld [vmem:[%s1 + $0x80] sm:$0xff]
        %v203 = vld [vmem:[%s1 + $0x88] sm:$0xff]
        %v204 = vld [vmem:[%s1 + $0x90] sm:$0xff]
        %v205 = vld [vmem:[%s1 + $0x98] sm:$0xff]
        %v206 = vld [vmem:[%s1 + $0x100] sm:$0xff]
        %v207 = vld [vmem:[%s1 + $0x108] sm:$0xff]
        %v208 = vld [vmem:[%s1 + $0x110] sm:$0xff]
        %v209 = vld [vmem:[%s1 + $0x118] sm:$0xff]
        %vm210 = vcmask 64512
        %v212 = vsel %vm210, %v198, 0
        %v215 = vsel %vm210, %v199, 0
        %v218 = vsel %vm210, %v200, 0
        %v221 = vsel %vm210, %v201, 0
        %223 = vmatprep.subr.mxu0 0.0
        %224 = vmatpush1.msra.mxu0 0.0
        %225 = vmatprep.subr.mxu0 0.0
        %226 = vmatpush1.msra.mxu0 0.0
        %227 = vmatprep.subr.mxu0 0.0
        %228 = vmatpush1.msra.mxu0 0.0
        %229 = vmatprep.subr.mxu0 0.0
        %230 = vmatpush1.msra.mxu0 0.0
        %231 = vmatprep.subr.mxu0 0.0
        %232 = vmatpush1.msra.mxu0 0.0
        %233 = vmatprep.subr.mxu0 0.0
        %234 = vmatpush1.msra.mxu0 0.0
        %235 = vmatprep.subr.mxu0 0.0
        %236 = vmatpush1.msra.mxu0 0.0
        %237 = vmatprep.subr.mxu0 0.0
        %238 = vmatpush1.msra.mxu0 0.0
        %239 = vmatprep.subr.mxu0 0.0
        %240 = vmatpush1.msra.mxu0 0.0
        %241 = vmatprep.subr.mxu0 0.0
        %242 = vmatpush1.msra.mxu0 0.0
        %243 = vmatprep.subr.mxu0 0.0
        %244 = vmatpush1.msra.mxu0 0.0
        %245 = vmatprep.subr.mxu0 0.0
        %246 = vmatpush1.msra.mxu0 0.0
        %247 = vmatprep.subr.mxu0 0.0
        %248 = vmatpush1.msra.mxu0 0.0
        %249 = vmatprep.subr.mxu0 0.0
        %250 = vmatpush1.msra.mxu0 0.0
        %251 = vmatprep.subr.mxu0 0.0
        %252 = vmatpush1.msra.mxu0 0.0
        %253 = vmatprep.subr.mxu0 %v197
        %254 = vmatpush1.msra.mxu0 %v196
        %255 = vmatprep.subr.mxu0 0.0
        %256 = vmatpush2.msra.mxu0 0.0
        %257 = vmatprep.subr.mxu0 0.0
        %258 = vmatpush2.msra.mxu0 0.0
        %259 = vmatprep.subr.mxu0 0.0
        %260 = vmatpush2.msra.mxu0 0.0
        %261 = vmatprep.subr.mxu0 0.0
        %262 = vmatpush2.msra.mxu0 0.0
        %263 = vmatprep.subr.mxu0 0.0
        %264 = vmatpush2.msra.mxu0 0.0
        %265 = vmatprep.subr.mxu0 0.0
        %266 = vmatpush2.msra.mxu0 0.0
        %267 = vmatprep.subr.mxu0 0.0
        %268 = vmatpush2.msra.mxu0 0.0
        %269 = vmatprep.subr.mxu0 0.0
        %270 = vmatpush2.msra.mxu0 0.0
        %271 = vmatprep.subr.mxu0 0.0
        %272 = vmatpush2.msra.mxu0 0.0
        %273 = vmatprep.subr.mxu0 0.0
        %274 = vmatpush2.msra.mxu0 0.0
        %275 = vmatprep.subr.mxu0 0.0
        %276 = vmatpush2.msra.mxu0 0.0
        %277 = vmatprep.subr.mxu0 0.0
        %278 = vmatpush2.msra.mxu0 0.0
        %279 = vmatprep.subr.mxu0 0.0
        %280 = vmatpush2.msra.mxu0 0.0
        %281 = vmatprep.subr.mxu0 0.0
        %282 = vmatpush2.msra.mxu0 0.0
        %283 = vmatprep.subr.mxu0 0.0
        %284 = vmatpush2.msra.mxu0 0.0
        %285 = vmatprep.subr.mxu0 0.0
        %286 = vmatpush2.msra.mxu0 0.0
        %287 = vmatprep.mubr.f32.mxu0 0.0
        %288 = vmatmul.mubr.f32.gmra.mxu0 %v212
        %v289 = vpop.f32.mrf.mxu0
        %v290 = vadd.f32 0.0, %v289
        %v291 = vpop.f32.mrf.mxu0
        %v292 = vadd.f32 0.0, %v291
        %293 = vmatprep.mubr.f32.mxu0 0.0
        %294 = vmatmul.mubr.f32.gmra.mxu0 %v215
        %v295 = vpop.f32.mrf.mxu0
        %v296 = vadd.f32 0.0, %v295
        %v297 = vpop.f32.mrf.mxu0
        %v298 = vadd.f32 0.0, %v297
        %299 = vmatprep.mubr.f32.mxu0 0.0
        %300 = vmatmul.mubr.f32.gmra.mxu0 %v218
        %v301 = vpop.f32.mrf.mxu0
        %v302 = vadd.f32 0.0, %v301
        %v303 = vpop.f32.mrf.mxu0
        %v304 = vadd.f32 0.0, %v303
        %305 = vmatprep.mubr.f32.mxu0 0.0
        %306 = vmatmul.mubr.f32.gmra.mxu0 %v221
        %v307 = vpop.f32.mrf.mxu0
        %v308 = vadd.f32 0.0, %v307
        %v309 = vpop.f32.mrf.mxu0
        %v310 = vadd.f32 0.0, %v309
        %311 = vdwg.mxu0
        %v313 = vsel %vm210, %v202, 0
        %v316 = vsel %vm210, %v203, 0
        %v319 = vsel %vm210, %v204, 0
        %v322 = vsel %vm210, %v205, 0
        %324 = vmatprep.subr.mxu0 0.0
        %325 = vmatpush1.msra.mxu0 0.0
        %326 = vmatprep.subr.mxu0 0.0
        %327 = vmatpush1.msra.mxu0 0.0
        %328 = vmatprep.subr.mxu0 0.0
        %329 = vmatpush1.msra.mxu0 0.0
        %330 = vmatprep.subr.mxu0 0.0
        %331 = vmatpush1.msra.mxu0 0.0
        %332 = vmatprep.subr.mxu0 0.0
        %333 = vmatpush1.msra.mxu0 0.0
        %334 = vmatprep.subr.mxu0 0.0
        %335 = vmatpush1.msra.mxu0 0.0
        %336 = vmatprep.subr.mxu0 0.0
        %337 = vmatpush1.msra.mxu0 0.0
        %338 = vmatprep.subr.mxu0 0.0
        %339 = vmatpush1.msra.mxu0 0.0
        %340 = vmatprep.subr.mxu0 0.0
        %341 = vmatpush1.msra.mxu0 0.0
        %342 = vmatprep.subr.mxu0 0.0
        %343 = vmatpush1.msra.mxu0 0.0
        %344 = vmatprep.subr.mxu0 0.0
        %345 = vmatpush1.msra.mxu0 0.0
        %346 = vmatprep.subr.mxu0 0.0
        %347 = vmatpush1.msra.mxu0 0.0
        %348 = vmatprep.subr.mxu0 0.0
        %349 = vmatpush1.msra.mxu0 0.0
        %350 = vmatprep.subr.mxu0 0.0
        %351 = vmatpush1.msra.mxu0 0.0
        %352 = vmatprep.subr.mxu0 0.0
        %353 = vmatpush1.msra.mxu0 0.0
        %354 = vmatprep.subr.mxu0 %v197
        %355 = vmatpush1.msra.mxu0 %v196
        %356 = vmatprep.subr.mxu0 0.0
        %357 = vmatpush2.msra.mxu0 0.0
        %358 = vmatprep.subr.mxu0 0.0
        %359 = vmatpush2.msra.mxu0 0.0
        %360 = vmatprep.subr.mxu0 0.0
        %361 = vmatpush2.msra.mxu0 0.0
        %362 = vmatprep.subr.mxu0 0.0
        %363 = vmatpush2.msra.mxu0 0.0
        %364 = vmatprep.subr.mxu0 0.0
        %365 = vmatpush2.msra.mxu0 0.0
        %366 = vmatprep.subr.mxu0 0.0
        %367 = vmatpush2.msra.mxu0 0.0
        %368 = vmatprep.subr.mxu0 0.0
        %369 = vmatpush2.msra.mxu0 0.0
        %370 = vmatprep.subr.mxu0 0.0
        %371 = vmatpush2.msra.mxu0 0.0
        %372 = vmatprep.subr.mxu0 0.0
        %373 = vmatpush2.msra.mxu0 0.0
        %374 = vmatprep.subr.mxu0 0.0
        %375 = vmatpush2.msra.mxu0 0.0
        %376 = vmatprep.subr.mxu0 0.0
        %377 = vmatpush2.msra.mxu0 0.0
        %378 = vmatprep.subr.mxu0 0.0
        %379 = vmatpush2.msra.mxu0 0.0
        %380 = vmatprep.subr.mxu0 0.0
        %381 = vmatpush2.msra.mxu0 0.0
        %382 = vmatprep.subr.mxu0 0.0
        %383 = vmatpush2.msra.mxu0 0.0
        %384 = vmatprep.subr.mxu0 0.0
        %385 = vmatpush2.msra.mxu0 0.0
        %386 = vmatprep.subr.mxu0 0.0
        %387 = vmatpush2.msra.mxu0 0.0
        %388 = vmatprep.mubr.f32.mxu0 0.0
        %389 = vmatmul.mubr.f32.gmra.mxu0 %v313
        %v390 = vpop.f32.mrf.mxu0
        %v391 = vadd.f32 0.0, %v390
        %v392 = vpop.f32.mrf.mxu0
        %v393 = vadd.f32 0.0, %v392
        %394 = vmatprep.mubr.f32.mxu0 0.0
        %395 = vmatmul.mubr.f32.gmra.mxu0 %v316
        %v396 = vpop.f32.mrf.mxu0
        %v397 = vadd.f32 0.0, %v396
        %v398 = vpop.f32.mrf.mxu0
        %v399 = vadd.f32 0.0, %v398
        %400 = vmatprep.mubr.f32.mxu0 0.0
        %401 = vmatmul.mubr.f32.gmra.mxu0 %v319
        %v402 = vpop.f32.mrf.mxu0
        %v403 = vadd.f32 0.0, %v402
        %v404 = vpop.f32.mrf.mxu0
        %v405 = vadd.f32 0.0, %v404
        %406 = vmatprep.mubr.f32.mxu0 0.0
        %407 = vmatmul.mubr.f32.gmra.mxu0 %v322
        %v408 = vpop.f32.mrf.mxu0
        %v409 = vadd.f32 0.0, %v408
        %v410 = vpop.f32.mrf.mxu0
        %v411 = vadd.f32 0.0, %v410
        %412 = vdwg.mxu0
        %v414 = vsel %vm210, %v206, 0
        %v417 = vsel %vm210, %v207, 0
        %v420 = vsel %vm210, %v208, 0
        %v423 = vsel %vm210, %v209, 0
        %425 = vmatprep.subr.mxu0 0.0
        %426 = vmatpush1.msra.mxu0 0.0
        %427 = vmatprep.subr.mxu0 0.0
        %428 = vmatpush1.msra.mxu0 0.0
        %429 = vmatprep.subr.mxu0 0.0
        %430 = vmatpush1.msra.mxu0 0.0
        %431 = vmatprep.subr.mxu0 0.0
        %432 = vmatpush1.msra.mxu0 0.0
        %433 = vmatprep.subr.mxu0 0.0
        %434 = vmatpush1.msra.mxu0 0.0
        %435 = vmatprep.subr.mxu0 0.0
        %436 = vmatpush1.msra.mxu0 0.0
        %437 = vmatprep.subr.mxu0 0.0
        %438 = vmatpush1.msra.mxu0 0.0
        %439 = vmatprep.subr.mxu0 0.0
        %440 = vmatpush1.msra.mxu0 0.0
        %441 = vmatprep.subr.mxu0 0.0
        %442 = vmatpush1.msra.mxu0 0.0
        %443 = vmatprep.subr.mxu0 0.0
        %444 = vmatpush1.msra.mxu0 0.0
        %445 = vmatprep.subr.mxu0 0.0
        %446 = vmatpush1.msra.mxu0 0.0
        %447 = vmatprep.subr.mxu0 0.0
        %448 = vmatpush1.msra.mxu0 0.0
        %449 = vmatprep.subr.mxu0 0.0
        %450 = vmatpush1.msra.mxu0 0.0
        %451 = vmatprep.subr.mxu0 0.0
        %452 = vmatpush1.msra.mxu0 0.0
        %453 = vmatprep.subr.mxu0 0.0
        %454 = vmatpush1.msra.mxu0 0.0
        %455 = vmatprep.subr.mxu0 %v197
        %456 = vmatpush1.msra.mxu0 %v196
        %457 = vmatprep.subr.mxu0 0.0
        %458 = vmatpush2.msra.mxu0 0.0
        %459 = vmatprep.subr.mxu0 0.0
        %460 = vmatpush2.msra.mxu0 0.0
        %461 = vmatprep.subr.mxu0 0.0
        %462 = vmatpush2.msra.mxu0 0.0
        %463 = vmatprep.subr.mxu0 0.0
        %464 = vmatpush2.msra.mxu0 0.0
        %465 = vmatprep.subr.mxu0 0.0
        %466 = vmatpush2.msra.mxu0 0.0
        %467 = vmatprep.subr.mxu0 0.0
        %468 = vmatpush2.msra.mxu0 0.0
        %469 = vmatprep.subr.mxu0 0.0
        %470 = vmatpush2.msra.mxu0 0.0
        %471 = vmatprep.subr.mxu0 0.0
        %472 = vmatpush2.msra.mxu0 0.0
        %473 = vmatprep.subr.mxu0 0.0
        %474 = vmatpush2.msra.mxu0 0.0
        %475 = vmatprep.subr.mxu0 0.0
        %476 = vmatpush2.msra.mxu0 0.0
        %477 = vmatprep.subr.mxu0 0.0
        %478 = vmatpush2.msra.mxu0 0.0
        %479 = vmatprep.subr.mxu0 0.0
        %480 = vmatpush2.msra.mxu0 0.0
        %481 = vmatprep.subr.mxu0 0.0
        %482 = vmatpush2.msra.mxu0 0.0
        %483 = vmatprep.subr.mxu0 0.0
        %484 = vmatpush2.msra.mxu0 0.0
        %485 = vmatprep.subr.mxu0 0.0
        %486 = vmatpush2.msra.mxu0 0.0
        %487 = vmatprep.subr.mxu0 0.0
        %488 = vmatpush2.msra.mxu0 0.0
        %489 = vmatprep.mubr.f32.mxu0 0.0
        %490 = vmatmul.mubr.f32.gmra.mxu0 %v414
        %v491 = vpop.f32.mrf.mxu0
        %v492 = vadd.f32 0.0, %v491
        %v493 = vpop.f32.mrf.mxu0
        %v494 = vadd.f32 0.0, %v493
        %495 = vmatprep.mubr.f32.mxu0 0.0
        %496 = vmatmul.mubr.f32.gmra.mxu0 %v417
        %v497 = vpop.f32.mrf.mxu0
        %v498 = vadd.f32 0.0, %v497
        %v499 = vpop.f32.mrf.mxu0
        %v500 = vadd.f32 0.0, %v499
        %501 = vmatprep.mubr.f32.mxu0 0.0
        %502 = vmatmul.mubr.f32.gmra.mxu0 %v420
        %v503 = vpop.f32.mrf.mxu0
        %v504 = vadd.f32 0.0, %v503
        %v505 = vpop.f32.mrf.mxu0
        %v506 = vadd.f32 0.0, %v505
        %507 = vmatprep.mubr.f32.mxu0 0.0
        %508 = vmatmul.mubr.f32.gmra.mxu0 %v423
        %v509 = vpop.f32.mrf.mxu0
        %v510 = vadd.f32 0.0, %v509
        %v511 = vpop.f32.mrf.mxu0
        %v512 = vadd.f32 0.0, %v511
        %513 = vdwg.mxu0
        %v514 = vmax.f32 %v391, %v393
        %515 = vmax.xlane.f32.xlu0 %v514
        %v516 = vpop.xlane.xlu0 %515
        %v517 = vmax.f32 %v397, %v399
        %518 = vmax.xlane.f32.xlu0 %v517
        %v519 = vpop.xlane.xlu0 %518
        %v520 = vmax.f32 %v403, %v405
        %521 = vmax.xlane.f32.xlu0 %v520
        %v522 = vpop.xlane.xlu0 %521
        %v523 = vmax.f32 %v409, %v411
        %524 = vmax.xlane.f32.xlu0 %v523
        %v525 = vpop.xlane.xlu0 %524
        %v526 = vsub.f32 %v391, %v516
        %v527 = vsub.f32 %v393, %v516
        %v528 = vsub.f32 %v397, %v519
        %v529 = vsub.f32 %v399, %v519
        %v530 = vsub.f32 %v403, %v522
        %v531 = vsub.f32 %v405, %v522
        %v532 = vsub.f32 %v409, %v525
        %v533 = vsub.f32 %v411, %v525
        %v534 = vmul.f32 %v526, 1.442695
        %v535 = vpow.pop %v534
        %v536 = vmul.f32 %v527, 1.442695
        %v537 = vpow.pop %v536
        %v538 = vmul.f32 %v528, 1.442695
        %v539 = vpow.pop %v538
        %v540 = vmul.f32 %v529, 1.442695
        %v541 = vpow.pop %v540
        %v542 = vmul.f32 %v530, 1.442695
        %v543 = vpow.pop %v542
        %v544 = vmul.f32 %v531, 1.442695
        %v545 = vpow.pop %v544
        %v546 = vmul.f32 %v532, 1.442695
        %v547 = vpow.pop %v546
        %v548 = vmul.f32 %v533, 1.442695
        %v549 = vpow.pop %v548
        %v550 = vadd.f32 %v535, %v537
        %551 = vadd.xlane.f32.xlu0 %v550
        %v552 = vpop.xlane.xlu0 %551
        %v553 = vadd.f32 %v539, %v541
        %554 = vadd.xlane.f32.xlu0 %v553
        %v555 = vpop.xlane.xlu0 %554
        %v556 = vadd.f32 %v543, %v545
        %557 = vadd.xlane.f32.xlu0 %v556
        %v558 = vpop.xlane.xlu0 %557
        %v559 = vadd.f32 %v547, %v549
        %560 = vadd.xlane.f32.xlu0 %v559
        %v561 = vpop.xlane.xlu0 %560
        %v562 = vrcp.pop %v552
        %v563 = vmul.f32 %v535, %v562
        %v564 = vmul.f32 %v537, %v562
        %v565 = vrcp.pop %v555
        %v566 = vmul.f32 %v539, %v565
        %v567 = vmul.f32 %v541, %v565
        %v568 = vrcp.pop %v558
        %v569 = vmul.f32 %v543, %v568
        %v570 = vmul.f32 %v545, %v568
        %v571 = vrcp.pop %v561
        %v572 = vmul.f32 %v547, %v571
        %v573 = vmul.f32 %v549, %v571
        %574 = vmatprep.subr.mxu0 0.0
        %575 = vmatpush1.xpose.msra.mxu0 0.0
        %576 = vmatprep.subr.mxu0 0.0
        %577 = vmatpush1.xpose.msra.mxu0 0.0
        %578 = vmatprep.subr.mxu0 0.0
        %579 = vmatpush1.xpose.msra.mxu0 0.0
        %580 = vmatprep.subr.mxu0 0.0
        %581 = vmatpush1.xpose.msra.mxu0 0.0
        %582 = vmatprep.subr.mxu0 0.0
        %583 = vmatpush1.xpose.msra.mxu0 0.0
        %584 = vmatprep.subr.mxu0 0.0
        %585 = vmatpush1.xpose.msra.mxu0 0.0
        %586 = vmatprep.subr.mxu0 0.0
        %587 = vmatpush1.xpose.msra.mxu0 0.0
        %588 = vmatprep.subr.mxu0 0.0
        %589 = vmatpush1.xpose.msra.mxu0 0.0
        %590 = vmatprep.subr.mxu0 0.0
        %591 = vmatpush1.xpose.msra.mxu0 0.0
        %592 = vmatprep.subr.mxu0 0.0
        %593 = vmatpush1.xpose.msra.mxu0 0.0
        %594 = vmatprep.subr.mxu0 0.0
        %595 = vmatpush1.xpose.msra.mxu0 0.0
        %596 = vmatprep.subr.mxu0 0.0
        %597 = vmatpush1.xpose.msra.mxu0 0.0
        %598 = vmatprep.subr.mxu0 %v512
        %599 = vmatpush1.xpose.msra.mxu0 %v510
        %600 = vmatprep.subr.mxu0 %v506
        %601 = vmatpush1.xpose.msra.mxu0 %v504
        %602 = vmatprep.subr.mxu0 %v500
        %603 = vmatpush1.xpose.msra.mxu0 %v498
        %604 = vmatprep.subr.mxu0 %v494
        %605 = vmatpush1.xpose.msra.mxu0 %v492
        %606 = vmatprep.subr.mxu0 0.0
        %607 = vmatpush2.xpose.msra.mxu0 0.0
        %608 = vmatprep.subr.mxu0 0.0
        %609 = vmatpush2.xpose.msra.mxu0 0.0
        %610 = vmatprep.subr.mxu0 0.0
        %611 = vmatpush2.xpose.msra.mxu0 0.0
        %612 = vmatprep.subr.mxu0 0.0
        %613 = vmatpush2.xpose.msra.mxu0 0.0
        %614 = vmatprep.subr.mxu0 0.0
        %615 = vmatpush2.xpose.msra.mxu0 0.0
        %616 = vmatprep.subr.mxu0 0.0
        %617 = vmatpush2.xpose.msra.mxu0 0.0
        %618 = vmatprep.subr.mxu0 0.0
        %619 = vmatpush2.xpose.msra.mxu0 0.0
        %620 = vmatprep.subr.mxu0 0.0
        %621 = vmatpush2.xpose.msra.mxu0 0.0
        %622 = vmatprep.subr.mxu0 0.0
        %623 = vmatpush2.xpose.msra.mxu0 0.0
        %624 = vmatprep.subr.mxu0 0.0
        %625 = vmatpush2.xpose.msra.mxu0 0.0
        %626 = vmatprep.subr.mxu0 0.0
        %627 = vmatpush2.xpose.msra.mxu0 0.0
        %628 = vmatprep.subr.mxu0 0.0
        %629 = vmatpush2.xpose.msra.mxu0 0.0
        %630 = vmatprep.subr.mxu0 0.0
        %631 = vmatpush2.xpose.msra.mxu0 0.0
        %632 = vmatprep.subr.mxu0 0.0
        %633 = vmatpush2.xpose.msra.mxu0 0.0
        %634 = vmatprep.subr.mxu0 0.0
        %635 = vmatpush2.xpose.msra.mxu0 0.0
        %636 = vmatprep.subr.mxu0 0.0
        %637 = vmatpush2.xpose.msra.mxu0 0.0
        %638 = vmatprep.mubr.f32.mxu0 %v564
        %639 = vmatmul.mubr.f32.gmra.mxu0 %v563
        %v640 = vpop.f32.mrf.mxu0
        %v641 = vadd.f32 0.0, %v640
        %v642 = vpop.f32.mrf.mxu0
        %643 = vmatprep.mubr.f32.mxu0 %v567
        %644 = vmatmul.mubr.f32.gmra.mxu0 %v566
        %v645 = vpop.f32.mrf.mxu0
        %v646 = vadd.f32 0.0, %v645
        %v647 = vpop.f32.mrf.mxu0
        %648 = vmatprep.mubr.f32.mxu0 %v570
        %649 = vmatmul.mubr.f32.gmra.mxu0 %v569
        %v650 = vpop.f32.mrf.mxu0
        %v651 = vadd.f32 0.0, %v650
        %v652 = vpop.f32.mrf.mxu0
        %653 = vmatprep.mubr.f32.mxu0 %v573
        %654 = vmatmul.mubr.f32.gmra.mxu0 %v572
        %v655 = vpop.f32.mrf.mxu0
        %v656 = vadd.f32 0.0, %v655
        %v657 = vpop.f32.mrf.mxu0
        %658 = vdwg.mxu0
        %659 = vxpose.xlu0.b32.start [1/16] %v641, 128
        %660 = vxpose.xlu0.b32.cont [2/16] %v646, 128
        %661 = vxpose.xlu0.b32.cont [3/16] %v651, 128
        %662 = vxpose.xlu0.b32.cont [4/16] %v656, 128
        %663 = vxpose.xlu0.b32.cont [5/16] 0.0, 128
        %664 = vxpose.xlu0.b32.cont [6/16] 0.0, 128
        %665 = vxpose.xlu0.b32.cont [7/16] 0.0, 128
        %666 = vxpose.xlu0.b32.cont [8/16] 0.0, 128
        %667 = vxpose.xlu0.b32.cont [9/16] 0.0, 128
        %668 = vxpose.xlu0.b32.cont [10/16] 0.0, 128
        %669 = vxpose.xlu0.b32.cont [11/16] 0.0, 128
        %670 = vxpose.xlu0.b32.cont [12/16] 0.0, 128
        %671 = vxpose.xlu0.b32.cont [13/16] 0.0, 128
        %672 = vxpose.xlu0.b32.cont [14/16] 0.0, 128
        %673 = vxpose.xlu0.b32.cont [15/16] 0.0, 128
        %674 = vxpose.xlu0.b32.end [16/16] 0.0, 128
        %v675 = vpop.trf.xlu0
        %v676 = vpop.trf.xlu0
        %v677 = vpop.trf.xlu0
        %v678 = vpop.trf.xlu0
        %v679 = vpop.trf.xlu0
        %v680 = vpop.trf.xlu0
        %v681 = vpop.trf.xlu0
        %v682 = vpop.trf.xlu0
        %v683 = vpop.trf.xlu0
        %v684 = vpop.trf.xlu0
        %v685 = vpop.trf.xlu0
        %v686 = vpop.trf.xlu0
        %v687 = vpop.trf.xlu0
        %v688 = vpop.trf.xlu0
        %v689 = vpop.trf.xlu0
        %v690 = vpop.trf.xlu0
        %vm691 = vcmask 261120
        %v693 = vsel %vm691, %v675, 0
        %v696 = vsel %vm691, %v676, 0
        %v699 = vsel %vm691, %v677, 0
        %v702 = vsel %vm691, %v678, 0
        %704 = vmatprep.subr.mxu0 0.0
        %705 = vmatpush1.msra.mxu0 0.0
        %706 = vmatprep.subr.mxu0 0.0
        %707 = vmatpush1.msra.mxu0 0.0
        %708 = vmatprep.subr.mxu0 0.0
        %709 = vmatpush1.msra.mxu0 0.0
        %710 = vmatprep.subr.mxu0 0.0
        %711 = vmatpush1.msra.mxu0 0.0
        %712 = vmatprep.subr.mxu0 0.0
        %713 = vmatpush1.msra.mxu0 0.0
        %714 = vmatprep.subr.mxu0 0.0
        %715 = vmatpush1.msra.mxu0 0.0
        %716 = vmatprep.subr.mxu0 0.0
        %717 = vmatpush1.msra.mxu0 0.0
        %718 = vmatprep.subr.mxu0 0.0
        %719 = vmatpush1.msra.mxu0 0.0
        %720 = vmatprep.subr.mxu0 0.0
        %721 = vmatpush1.msra.mxu0 0.0
        %722 = vmatprep.subr.mxu0 0.0
        %723 = vmatpush1.msra.mxu0 0.0
        %724 = vmatprep.subr.mxu0 0.0
        %725 = vmatpush1.msra.mxu0 0.0
        %726 = vmatprep.subr.mxu0 0.0
        %727 = vmatpush1.msra.mxu0 0.0
        %728 = vmatprep.subr.mxu0 %v310
        %729 = vmatpush1.msra.mxu0 %v308
        %730 = vmatprep.subr.mxu0 %v304
        %731 = vmatpush1.msra.mxu0 %v302
        %732 = vmatprep.subr.mxu0 %v298
        %733 = vmatpush1.msra.mxu0 %v296
        %734 = vmatprep.subr.mxu0 %v292
        %735 = vmatpush1.msra.mxu0 %v290
        %736 = vmatprep.subr.mxu0 0.0
        %737 = vmatpush2.msra.mxu0 0.0
        %738 = vmatprep.subr.mxu0 0.0
        %739 = vmatpush2.msra.mxu0 0.0
        %740 = vmatprep.subr.mxu0 0.0
        %741 = vmatpush2.msra.mxu0 0.0
        %742 = vmatprep.subr.mxu0 0.0
        %743 = vmatpush2.msra.mxu0 0.0
        %744 = vmatprep.subr.mxu0 0.0
        %745 = vmatpush2.msra.mxu0 0.0
        %746 = vmatprep.subr.mxu0 0.0
        %747 = vmatpush2.msra.mxu0 0.0
        %748 = vmatprep.subr.mxu0 0.0
        %749 = vmatpush2.msra.mxu0 0.0
        %750 = vmatprep.subr.mxu0 0.0
        %751 = vmatpush2.msra.mxu0 0.0
        %752 = vmatprep.subr.mxu0 0.0
        %753 = vmatpush2.msra.mxu0 0.0
        %754 = vmatprep.subr.mxu0 0.0
        %755 = vmatpush2.msra.mxu0 0.0
        %756 = vmatprep.subr.mxu0 0.0
        %757 = vmatpush2.msra.mxu0 0.0
        %758 = vmatprep.subr.mxu0 0.0
        %759 = vmatpush2.msra.mxu0 0.0
        %760 = vmatprep.subr.mxu0 0.0
        %761 = vmatpush2.msra.mxu0 0.0
        %762 = vmatprep.subr.mxu0 0.0
        %763 = vmatpush2.msra.mxu0 0.0
        %764 = vmatprep.subr.mxu0 0.0
        %765 = vmatpush2.msra.mxu0 0.0
        %766 = vmatprep.subr.mxu0 0.0
        %767 = vmatpush2.msra.mxu0 0.0
        %768 = vmatprep.mubr.f32.mxu0 0.0
        %769 = vmatmul.mubr.f32.gmra.mxu0 %v693
        %v770 = vpop.f32.mrf.mxu0
        %v771 = vadd.f32 0.0, %v770
        %v772 = vpop.f32.mrf.mxu0
        %v773 = vadd.f32 0.0, %v772
        %774 = vmatprep.mubr.f32.mxu0 0.0
        %775 = vmatmul.mubr.f32.gmra.mxu0 %v696
        %v776 = vpop.f32.mrf.mxu0
        %v777 = vadd.f32 0.0, %v776
        %v778 = vpop.f32.mrf.mxu0
        %v779 = vadd.f32 0.0, %v778
        %780 = vmatprep.mubr.f32.mxu0 0.0
        %781 = vmatmul.mubr.f32.gmra.mxu0 %v699
        %v782 = vpop.f32.mrf.mxu0
        %v783 = vadd.f32 0.0, %v782
        %v784 = vpop.f32.mrf.mxu0
        %v785 = vadd.f32 0.0, %v784
        %786 = vmatprep.mubr.f32.mxu0 0.0
        %787 = vmatmul.mubr.f32.gmra.mxu0 %v702
        %v788 = vpop.f32.mrf.mxu0
        %v789 = vadd.f32 0.0, %v788
        %v790 = vpop.f32.mrf.mxu0
        %v791 = vadd.f32 0.0, %v790
        %792 = vdwg.mxu0
        %793 = vst [vmem:[#allocation2] sm:$0xff] %v771
        %794 = vst [vmem:[#allocation2 + $0x8] sm:$0xff] %v773
        %795 = vst [vmem:[#allocation2 + $0x10] sm:$0xff] %v777
        %796 = vst [vmem:[#allocation2 + $0x18] sm:$0xff] %v779
        %797 = vst [vmem:[#allocation2 + $0x20] sm:$0xff] %v783
        %798 = vst [vmem:[#allocation2 + $0x28] sm:$0xff] %v785
        %799 = vst [vmem:[#allocation2 + $0x30] sm:$0xff] %v789
        %800 = vst [vmem:[#allocation2 + $0x38] sm:$0xff] %v791
        %v801 = vld [vmem:[%s1 + $0x20] sm:$0xff]
        %v802 = vld [vmem:[%s1 + $0x28] sm:$0xff]
        %v803 = vld [vmem:[%s1 + $0x30] sm:$0xff]
        %v804 = vld [vmem:[%s1 + $0x38] sm:$0xff]
        %v805 = vld [vmem:[%s1 + $0xa0] sm:$0xff]
        %v806 = vld [vmem:[%s1 + $0xa8] sm:$0xff]
        %v807 = vld [vmem:[%s1 + $0xb0] sm:$0xff]
        %v808 = vld [vmem:[%s1 + $0xb8] sm:$0xff]
        %v809 = vld [vmem:[%s1 + $0x120] sm:$0xff]
        %v810 = vld [vmem:[%s1 + $0x128] sm:$0xff]
        %v811 = vld [vmem:[%s1 + $0x130] sm:$0xff]
        %v812 = vld [vmem:[%s1 + $0x138] sm:$0xff]
        %v814 = vsel %vm210, %v801, 0
        %v817 = vsel %vm210, %v802, 0
        %v820 = vsel %vm210, %v803, 0
        %v823 = vsel %vm210, %v804, 0
        %825 = vmatprep.subr.mxu0 0.0
        %826 = vmatpush1.msra.mxu0 0.0
        %827 = vmatprep.subr.mxu0 0.0
        %828 = vmatpush1.msra.mxu0 0.0
        %829 = vmatprep.subr.mxu0 0.0
        %830 = vmatpush1.msra.mxu0 0.0
        %831 = vmatprep.subr.mxu0 0.0
        %832 = vmatpush1.msra.mxu0 0.0
        %833 = vmatprep.subr.mxu0 0.0
        %834 = vmatpush1.msra.mxu0 0.0
        %835 = vmatprep.subr.mxu0 0.0
        %836 = vmatpush1.msra.mxu0 0.0
        %837 = vmatprep.subr.mxu0 0.0
        %838 = vmatpush1.msra.mxu0 0.0
        %839 = vmatprep.subr.mxu0 0.0
        %840 = vmatpush1.msra.mxu0 0.0
        %841 = vmatprep.subr.mxu0 0.0
        %842 = vmatpush1.msra.mxu0 0.0
        %843 = vmatprep.subr.mxu0 0.0
        %844 = vmatpush1.msra.mxu0 0.0
        %845 = vmatprep.subr.mxu0 0.0
        %846 = vmatpush1.msra.mxu0 0.0
        %847 = vmatprep.subr.mxu0 0.0
        %848 = vmatpush1.msra.mxu0 0.0
        %849 = vmatprep.subr.mxu0 0.0
        %850 = vmatpush1.msra.mxu0 0.0
        %851 = vmatprep.subr.mxu0 0.0
        %852 = vmatpush1.msra.mxu0 0.0
        %853 = vmatprep.subr.mxu0 0.0
        %854 = vmatpush1.msra.mxu0 0.0
        %855 = vmatprep.subr.mxu0 %v197
        %856 = vmatpush1.msra.mxu0 %v196
        %857 = vmatprep.subr.mxu0 0.0
        %858 = vmatpush2.msra.mxu0 0.0
        %859 = vmatprep.subr.mxu0 0.0
        %860 = vmatpush2.msra.mxu0 0.0
        %861 = vmatprep.subr.mxu0 0.0
        %862 = vmatpush2.msra.mxu0 0.0
        %863 = vmatprep.subr.mxu0 0.0
        %864 = vmatpush2.msra.mxu0 0.0
        %865 = vmatprep.subr.mxu0 0.0
        %866 = vmatpush2.msra.mxu0 0.0
        %867 = vmatprep.subr.mxu0 0.0
        %868 = vmatpush2.msra.mxu0 0.0
        %869 = vmatprep.subr.mxu0 0.0
        %870 = vmatpush2.msra.mxu0 0.0
        %871 = vmatprep.subr.mxu0 0.0
        %872 = vmatpush2.msra.mxu0 0.0
        %873 = vmatprep.subr.mxu0 0.0
        %874 = vmatpush2.msra.mxu0 0.0
        %875 = vmatprep.subr.mxu0 0.0
        %876 = vmatpush2.msra.mxu0 0.0
        %877 = vmatprep.subr.mxu0 0.0
        %878 = vmatpush2.msra.mxu0 0.0
        %879 = vmatprep.subr.mxu0 0.0
        %880 = vmatpush2.msra.mxu0 0.0
        %881 = vmatprep.subr.mxu0 0.0
        %882 = vmatpush2.msra.mxu0 0.0
        %883 = vmatprep.subr.mxu0 0.0
        %884 = vmatpush2.msra.mxu0 0.0
        %885 = vmatprep.subr.mxu0 0.0
        %886 = vmatpush2.msra.mxu0 0.0
        %887 = vmatprep.subr.mxu0 0.0
        %888 = vmatpush2.msra.mxu0 0.0
        %889 = vmatprep.mubr.f32.mxu0 0.0
        %890 = vmatmul.mubr.f32.gmra.mxu0 %v814
        %v891 = vpop.f32.mrf.mxu0
        %v892 = vadd.f32 0.0, %v891
        %v893 = vpop.f32.mrf.mxu0
        %v894 = vadd.f32 0.0, %v893
        %895 = vmatprep.mubr.f32.mxu0 0.0
        %896 = vmatmul.mubr.f32.gmra.mxu0 %v817
        %v897 = vpop.f32.mrf.mxu0
        %v898 = vadd.f32 0.0, %v897
        %v899 = vpop.f32.mrf.mxu0
        %v900 = vadd.f32 0.0, %v899
        %901 = vmatprep.mubr.f32.mxu0 0.0
        %902 = vmatmul.mubr.f32.gmra.mxu0 %v820
        %v903 = vpop.f32.mrf.mxu0
        %v904 = vadd.f32 0.0, %v903
        %v905 = vpop.f32.mrf.mxu0
        %v906 = vadd.f32 0.0, %v905
        %907 = vmatprep.mubr.f32.mxu0 0.0
        %908 = vmatmul.mubr.f32.gmra.mxu0 %v823
        %v909 = vpop.f32.mrf.mxu0
        %v910 = vadd.f32 0.0, %v909
        %v911 = vpop.f32.mrf.mxu0
        %v912 = vadd.f32 0.0, %v911
        %913 = vdwg.mxu0
        %v915 = vsel %vm210, %v805, 0
        %v918 = vsel %vm210, %v806, 0
        %v921 = vsel %vm210, %v807, 0
        %v924 = vsel %vm210, %v808, 0
        %926 = vmatprep.subr.mxu0 0.0
        %927 = vmatpush1.msra.mxu0 0.0
        %928 = vmatprep.subr.mxu0 0.0
        %929 = vmatpush1.msra.mxu0 0.0
        %930 = vmatprep.subr.mxu0 0.0
        %931 = vmatpush1.msra.mxu0 0.0
        %932 = vmatprep.subr.mxu0 0.0
        %933 = vmatpush1.msra.mxu0 0.0
        %934 = vmatprep.subr.mxu0 0.0
        %935 = vmatpush1.msra.mxu0 0.0
        %936 = vmatprep.subr.mxu0 0.0
        %937 = vmatpush1.msra.mxu0 0.0
        %938 = vmatprep.subr.mxu0 0.0
        %939 = vmatpush1.msra.mxu0 0.0
        %940 = vmatprep.subr.mxu0 0.0
        %941 = vmatpush1.msra.mxu0 0.0
        %942 = vmatprep.subr.mxu0 0.0
        %943 = vmatpush1.msra.mxu0 0.0
        %944 = vmatprep.subr.mxu0 0.0
        %945 = vmatpush1.msra.mxu0 0.0
        %946 = vmatprep.subr.mxu0 0.0
        %947 = vmatpush1.msra.mxu0 0.0
        %948 = vmatprep.subr.mxu0 0.0
        %949 = vmatpush1.msra.mxu0 0.0
        %950 = vmatprep.subr.mxu0 0.0
        %951 = vmatpush1.msra.mxu0 0.0
        %952 = vmatprep.subr.mxu0 0.0
        %953 = vmatpush1.msra.mxu0 0.0
        %954 = vmatprep.subr.mxu0 0.0
        %955 = vmatpush1.msra.mxu0 0.0
        %956 = vmatprep.subr.mxu0 %v197
        %957 = vmatpush1.msra.mxu0 %v196
        %958 = vmatprep.subr.mxu0 0.0
        %959 = vmatpush2.msra.mxu0 0.0
        %960 = vmatprep.subr.mxu0 0.0
        %961 = vmatpush2.msra.mxu0 0.0
        %962 = vmatprep.subr.mxu0 0.0
        %963 = vmatpush2.msra.mxu0 0.0
        %964 = vmatprep.subr.mxu0 0.0
        %965 = vmatpush2.msra.mxu0 0.0
        %966 = vmatprep.subr.mxu0 0.0
        %967 = vmatpush2.msra.mxu0 0.0
        %968 = vmatprep.subr.mxu0 0.0
        %969 = vmatpush2.msra.mxu0 0.0
        %970 = vmatprep.subr.mxu0 0.0
        %971 = vmatpush2.msra.mxu0 0.0
        %972 = vmatprep.subr.mxu0 0.0
        %973 = vmatpush2.msra.mxu0 0.0
        %974 = vmatprep.subr.mxu0 0.0
        %975 = vmatpush2.msra.mxu0 0.0
        %976 = vmatprep.subr.mxu0 0.0
        %977 = vmatpush2.msra.mxu0 0.0
        %978 = vmatprep.subr.mxu0 0.0
        %979 = vmatpush2.msra.mxu0 0.0
        %980 = vmatprep.subr.mxu0 0.0
        %981 = vmatpush2.msra.mxu0 0.0
        %982 = vmatprep.subr.mxu0 0.0
        %983 = vmatpush2.msra.mxu0 0.0
        %984 = vmatprep.subr.mxu0 0.0
        %985 = vmatpush2.msra.mxu0 0.0
        %986 = vmatprep.subr.mxu0 0.0
        %987 = vmatpush2.msra.mxu0 0.0
        %988 = vmatprep.subr.mxu0 0.0
        %989 = vmatpush2.msra.mxu0 0.0
        %990 = vmatprep.mubr.f32.mxu0 0.0
        %991 = vmatmul.mubr.f32.gmra.mxu0 %v915
        %v992 = vpop.f32.mrf.mxu0
        %v993 = vadd.f32 0.0, %v992
        %v994 = vpop.f32.mrf.mxu0
        %v995 = vadd.f32 0.0, %v994
        %996 = vmatprep.mubr.f32.mxu0 0.0
        %997 = vmatmul.mubr.f32.gmra.mxu0 %v918
        %v998 = vpop.f32.mrf.mxu0
        %v999 = vadd.f32 0.0, %v998
        %v1000 = vpop.f32.mrf.mxu0
        %v1001 = vadd.f32 0.0, %v1000
        %1002 = vmatprep.mubr.f32.mxu0 0.0
        %1003 = vmatmul.mubr.f32.gmra.mxu0 %v921
        %v1004 = vpop.f32.mrf.mxu0
        %v1005 = vadd.f32 0.0, %v1004
        %v1006 = vpop.f32.mrf.mxu0
        %v1007 = vadd.f32 0.0, %v1006
        %1008 = vmatprep.mubr.f32.mxu0 0.0
        %1009 = vmatmul.mubr.f32.gmra.mxu0 %v924
        %v1010 = vpop.f32.mrf.mxu0
        %v1011 = vadd.f32 0.0, %v1010
        %v1012 = vpop.f32.mrf.mxu0
        %v1013 = vadd.f32 0.0, %v1012
        %1014 = vdwg.mxu0
        %v1016 = vsel %vm210, %v809, 0
        %v1019 = vsel %vm210, %v810, 0
        %v1022 = vsel %vm210, %v811, 0
        %v1025 = vsel %vm210, %v812, 0
        %1027 = vmatprep.subr.mxu0 0.0
        %1028 = vmatpush1.msra.mxu0 0.0
        %1029 = vmatprep.subr.mxu0 0.0
        %1030 = vmatpush1.msra.mxu0 0.0
        %1031 = vmatprep.subr.mxu0 0.0
        %1032 = vmatpush1.msra.mxu0 0.0
        %1033 = vmatprep.subr.mxu0 0.0
        %1034 = vmatpush1.msra.mxu0 0.0
        %1035 = vmatprep.subr.mxu0 0.0
        %1036 = vmatpush1.msra.mxu0 0.0
        %1037 = vmatprep.subr.mxu0 0.0
        %1038 = vmatpush1.msra.mxu0 0.0
        %1039 = vmatprep.subr.mxu0 0.0
        %1040 = vmatpush1.msra.mxu0 0.0
        %1041 = vmatprep.subr.mxu0 0.0
        %1042 = vmatpush1.msra.mxu0 0.0
        %1043 = vmatprep.subr.mxu0 0.0
        %1044 = vmatpush1.msra.mxu0 0.0
        %1045 = vmatprep.subr.mxu0 0.0
        %1046 = vmatpush1.msra.mxu0 0.0
        %1047 = vmatprep.subr.mxu0 0.0
        %1048 = vmatpush1.msra.mxu0 0.0
        %1049 = vmatprep.subr.mxu0 0.0
        %1050 = vmatpush1.msra.mxu0 0.0
        %1051 = vmatprep.subr.mxu0 0.0
        %1052 = vmatpush1.msra.mxu0 0.0
        %1053 = vmatprep.subr.mxu0 0.0
        %1054 = vmatpush1.msra.mxu0 0.0
        %1055 = vmatprep.subr.mxu0 0.0
        %1056 = vmatpush1.msra.mxu0 0.0
        %1057 = vmatprep.subr.mxu0 %v197
        %1058 = vmatpush1.msra.mxu0 %v196
        %1059 = vmatprep.subr.mxu0 0.0
        %1060 = vmatpush2.msra.mxu0 0.0
        %1061 = vmatprep.subr.mxu0 0.0
        %1062 = vmatpush2.msra.mxu0 0.0
        %1063 = vmatprep.subr.mxu0 0.0
        %1064 = vmatpush2.msra.mxu0 0.0
        %1065 = vmatprep.subr.mxu0 0.0
        %1066 = vmatpush2.msra.mxu0 0.0
        %1067 = vmatprep.subr.mxu0 0.0
        %1068 = vmatpush2.msra.mxu0 0.0
        %1069 = vmatprep.subr.mxu0 0.0
        %1070 = vmatpush2.msra.mxu0 0.0
        %1071 = vmatprep.subr.mxu0 0.0
        %1072 = vmatpush2.msra.mxu0 0.0
        %1073 = vmatprep.subr.mxu0 0.0
        %1074 = vmatpush2.msra.mxu0 0.0
        %1075 = vmatprep.subr.mxu0 0.0
        %1076 = vmatpush2.msra.mxu0 0.0
        %1077 = vmatprep.subr.mxu0 0.0
        %1078 = vmatpush2.msra.mxu0 0.0
        %1079 = vmatprep.subr.mxu0 0.0
        %1080 = vmatpush2.msra.mxu0 0.0
        %1081 = vmatprep.subr.mxu0 0.0
        %1082 = vmatpush2.msra.mxu0 0.0
        %1083 = vmatprep.subr.mxu0 0.0
        %1084 = vmatpush2.msra.mxu0 0.0
        %1085 = vmatprep.subr.mxu0 0.0
        %1086 = vmatpush2.msra.mxu0 0.0
        %1087 = vmatprep.subr.mxu0 0.0
        %1088 = vmatpush2.msra.mxu0 0.0
        %1089 = vmatprep.subr.mxu0 0.0
        %1090 = vmatpush2.msra.mxu0 0.0
        %1091 = vmatprep.mubr.f32.mxu0 0.0
        %1092 = vmatmul.mubr.f32.gmra.mxu0 %v1016
        %v1093 = vpop.f32.mrf.mxu0
        %v1094 = vadd.f32 0.0, %v1093
        %v1095 = vpop.f32.mrf.mxu0
        %v1096 = vadd.f32 0.0, %v1095
        %1097 = vmatprep.mubr.f32.mxu0 0.0
        %1098 = vmatmul.mubr.f32.gmra.mxu0 %v1019
        %v1099 = vpop.f32.mrf.mxu0
        %v1100 = vadd.f32 0.0, %v1099
        %v1101 = vpop.f32.mrf.mxu0
        %v1102 = vadd.f32 0.0, %v1101
        %1103 = vmatprep.mubr.f32.mxu0 0.0
        %1104 = vmatmul.mubr.f32.gmra.mxu0 %v1022
        %v1105 = vpop.f32.mrf.mxu0
        %v1106 = vadd.f32 0.0, %v1105
        %v1107 = vpop.f32.mrf.mxu0
        %v1108 = vadd.f32 0.0, %v1107
        %1109 = vmatprep.mubr.f32.mxu0 0.0
        %1110 = vmatmul.mubr.f32.gmra.mxu0 %v1025
        %v1111 = vpop.f32.mrf.mxu0
        %v1112 = vadd.f32 0.0, %v1111
        %v1113 = vpop.f32.mrf.mxu0
        %v1114 = vadd.f32 0.0, %v1113
        %1115 = vdwg.mxu0
        %v1116 = vmax.f32 %v993, %v995
        %1117 = vmax.xlane.f32.xlu0 %v1116
        %v1118 = vpop.xlane.xlu0 %1117
        %v1119 = vmax.f32 %v999, %v1001
        %1120 = vmax.xlane.f32.xlu0 %v1119
        %v1121 = vpop.xlane.xlu0 %1120
        %v1122 = vmax.f32 %v1005, %v1007
        %1123 = vmax.xlane.f32.xlu0 %v1122
        %v1124 = vpop.xlane.xlu0 %1123
        %v1125 = vmax.f32 %v1011, %v1013
        %1126 = vmax.xlane.f32.xlu0 %v1125
        %v1127 = vpop.xlane.xlu0 %1126
        %v1128 = vsub.f32 %v993, %v1118
        %v1129 = vsub.f32 %v995, %v1118
        %v1130 = vsub.f32 %v999, %v1121
        %v1131 = vsub.f32 %v1001, %v1121
        %v1132 = vsub.f32 %v1005, %v1124
        %v1133 = vsub.f32 %v1007, %v1124
        %v1134 = vsub.f32 %v1011, %v1127
        %v1135 = vsub.f32 %v1013, %v1127
        %v1136 = vmul.f32 %v1128, 1.442695
        %v1137 = vpow.pop %v1136
        %v1138 = vmul.f32 %v1129, 1.442695
        %v1139 = vpow.pop %v1138
        %v1140 = vmul.f32 %v1130, 1.442695
        %v1141 = vpow.pop %v1140
        %v1142 = vmul.f32 %v1131, 1.442695
        %v1143 = vpow.pop %v1142
        %v1144 = vmul.f32 %v1132, 1.442695
        %v1145 = vpow.pop %v1144
        %v1146 = vmul.f32 %v1133, 1.442695
        %v1147 = vpow.pop %v1146
        %v1148 = vmul.f32 %v1134, 1.442695
        %v1149 = vpow.pop %v1148
        %v1150 = vmul.f32 %v1135, 1.442695
        %v1151 = vpow.pop %v1150
        %v1152 = vadd.f32 %v1137, %v1139
        %1153 = vadd.xlane.f32.xlu0 %v1152
        %v1154 = vpop.xlane.xlu0 %1153
        %v1155 = vadd.f32 %v1141, %v1143
        %1156 = vadd.xlane.f32.xlu0 %v1155
        %v1157 = vpop.xlane.xlu0 %1156
        %v1158 = vadd.f32 %v1145, %v1147
        %1159 = vadd.xlane.f32.xlu0 %v1158
        %v1160 = vpop.xlane.xlu0 %1159
        %v1161 = vadd.f32 %v1149, %v1151
        %1162 = vadd.xlane.f32.xlu0 %v1161
        %v1163 = vpop.xlane.xlu0 %1162
        %v1164 = vrcp.pop %v1154
        %v1165 = vmul.f32 %v1137, %v1164
        %v1166 = vmul.f32 %v1139, %v1164
        %v1167 = vrcp.pop %v1157
        %v1168 = vmul.f32 %v1141, %v1167
        %v1169 = vmul.f32 %v1143, %v1167
        %v1170 = vrcp.pop %v1160
        %v1171 = vmul.f32 %v1145, %v1170
        %v1172 = vmul.f32 %v1147, %v1170
        %v1173 = vrcp.pop %v1163
        %v1174 = vmul.f32 %v1149, %v1173
        %v1175 = vmul.f32 %v1151, %v1173
        %1176 = vmatprep.subr.mxu0 0.0
        %1177 = vmatpush1.xpose.msra.mxu0 0.0
        %1178 = vmatprep.subr.mxu0 0.0
        %1179 = vmatpush1.xpose.msra.mxu0 0.0
        %1180 = vmatprep.subr.mxu0 0.0
        %1181 = vmatpush1.xpose.msra.mxu0 0.0
        %1182 = vmatprep.subr.mxu0 0.0
        %1183 = vmatpush1.xpose.msra.mxu0 0.0
        %1184 = vmatprep.subr.mxu0 0.0
        %1185 = vmatpush1.xpose.msra.mxu0 0.0
        %1186 = vmatprep.subr.mxu0 0.0
        %1187 = vmatpush1.xpose.msra.mxu0 0.0
        %1188 = vmatprep.subr.mxu0 0.0
        %1189 = vmatpush1.xpose.msra.mxu0 0.0
        %1190 = vmatprep.subr.mxu0 0.0
        %1191 = vmatpush1.xpose.msra.mxu0 0.0
        %1192 = vmatprep.subr.mxu0 0.0
        %1193 = vmatpush1.xpose.msra.mxu0 0.0
        %1194 = vmatprep.subr.mxu0 0.0
        %1195 = vmatpush1.xpose.msra.mxu0 0.0
        %1196 = vmatprep.subr.mxu0 0.0
        %1197 = vmatpush1.xpose.msra.mxu0 0.0
        %1198 = vmatprep.subr.mxu0 0.0
        %1199 = vmatpush1.xpose.msra.mxu0 0.0
        %1200 = vmatprep.subr.mxu0 %v1114
        %1201 = vmatpush1.xpose.msra.mxu0 %v1112
        %1202 = vmatprep.subr.mxu0 %v1108
        %1203 = vmatpush1.xpose.msra.mxu0 %v1106
        %1204 = vmatprep.subr.mxu0 %v1102
        %1205 = vmatpush1.xpose.msra.mxu0 %v1100
        %1206 = vmatprep.subr.mxu0 %v1096
        %1207 = vmatpush1.xpose.msra.mxu0 %v1094
        %1208 = vmatprep.subr.mxu0 0.0
        %1209 = vmatpush2.xpose.msra.mxu0 0.0
        %1210 = vmatprep.subr.mxu0 0.0
        %1211 = vmatpush2.xpose.msra.mxu0 0.0
        %1212 = vmatprep.subr.mxu0 0.0
        %1213 = vmatpush2.xpose.msra.mxu0 0.0
        %1214 = vmatprep.subr.mxu0 0.0
        %1215 = vmatpush2.xpose.msra.mxu0 0.0
        %1216 = vmatprep.subr.mxu0 0.0
        %1217 = vmatpush2.xpose.msra.mxu0 0.0
        %1218 = vmatprep.subr.mxu0 0.0
        %1219 = vmatpush2.xpose.msra.mxu0 0.0
        %1220 = vmatprep.subr.mxu0 0.0
        %1221 = vmatpush2.xpose.msra.mxu0 0.0
        %1222 = vmatprep.subr.mxu0 0.0
        %1223 = vmatpush2.xpose.msra.mxu0 0.0
        %1224 = vmatprep.subr.mxu0 0.0
        %1225 = vmatpush2.xpose.msra.mxu0 0.0
        %1226 = vmatprep.subr.mxu0 0.0
        %1227 = vmatpush2.xpose.msra.mxu0 0.0
        %1228 = vmatprep.subr.mxu0 0.0
        %1229 = vmatpush2.xpose.msra.mxu0 0.0
        %1230 = vmatprep.subr.mxu0 0.0
        %1231 = vmatpush2.xpose.msra.mxu0 0.0
        %1232 = vmatprep.subr.mxu0 0.0
        %1233 = vmatpush2.xpose.msra.mxu0 0.0
        %1234 = vmatprep.subr.mxu0 0.0
        %1235 = vmatpush2.xpose.msra.mxu0 0.0
        %1236 = vmatprep.subr.mxu0 0.0
        %1237 = vmatpush2.xpose.msra.mxu0 0.0
        %1238 = vmatprep.subr.mxu0 0.0
        %1239 = vmatpush2.xpose.msra.mxu0 0.0
        %1240 = vmatprep.mubr.f32.mxu0 %v1166
        %1241 = vmatmul.mubr.f32.gmra.mxu0 %v1165
        %v1242 = vpop.f32.mrf.mxu0
        %v1243 = vadd.f32 0.0, %v1242
        %v1244 = vpop.f32.mrf.mxu0
        %1245 = vmatprep.mubr.f32.mxu0 %v1169
        %1246 = vmatmul.mubr.f32.gmra.mxu0 %v1168
        %v1247 = vpop.f32.mrf.mxu0
        %v1248 = vadd.f32 0.0, %v1247
        %v1249 = vpop.f32.mrf.mxu0
        %1250 = vmatprep.mubr.f32.mxu0 %v1172
        %1251 = vmatmul.mubr.f32.gmra.mxu0 %v1171
        %v1252 = vpop.f32.mrf.mxu0
        %v1253 = vadd.f32 0.0, %v1252
        %v1254 = vpop.f32.mrf.mxu0
        %1255 = vmatprep.mubr.f32.mxu0 %v1175
        %1256 = vmatmul.mubr.f32.gmra.mxu0 %v1174
        %v1257 = vpop.f32.mrf.mxu0
        %v1258 = vadd.f32 0.0, %v1257
        %v1259 = vpop.f32.mrf.mxu0
        %1260 = vdwg.mxu0
        %1261 = vxpose.xlu0.b32.start [1/16] %v1243, 128
        %1262 = vxpose.xlu0.b32.cont [2/16] %v1248, 128
        %1263 = vxpose.xlu0.b32.cont [3/16] %v1253, 128
        %1264 = vxpose.xlu0.b32.cont [4/16] %v1258, 128
        %1265 = vxpose.xlu0.b32.cont [5/16] 0.0, 128
        %1266 = vxpose.xlu0.b32.cont [6/16] 0.0, 128
        %1267 = vxpose.xlu0.b32.cont [7/16] 0.0, 128
        %1268 = vxpose.xlu0.b32.cont [8/16] 0.0, 128
        %1269 = vxpose.xlu0.b32.cont [9/16] 0.0, 128
        %1270 = vxpose.xlu0.b32.cont [10/16] 0.0, 128
        %1271 = vxpose.xlu0.b32.cont [11/16] 0.0, 128
        %1272 = vxpose.xlu0.b32.cont [12/16] 0.0, 128
        %1273 = vxpose.xlu0.b32.cont [13/16] 0.0, 128
        %1274 = vxpose.xlu0.b32.cont [14/16] 0.0, 128
        %1275 = vxpose.xlu0.b32.cont [15/16] 0.0, 128
        %1276 = vxpose.xlu0.b32.end [16/16] 0.0, 128
        %v1277 = vpop.trf.xlu0
        %v1278 = vpop.trf.xlu0
        %v1279 = vpop.trf.xlu0
        %v1280 = vpop.trf.xlu0
        %v1281 = vpop.trf.xlu0
        %v1282 = vpop.trf.xlu0
        %v1283 = vpop.trf.xlu0
        %v1284 = vpop.trf.xlu0
        %v1285 = vpop.trf.xlu0
        %v1286 = vpop.trf.xlu0
        %v1287 = vpop.trf.xlu0
        %v1288 = vpop.trf.xlu0
        %v1289 = vpop.trf.xlu0
        %v1290 = vpop.trf.xlu0
        %v1291 = vpop.trf.xlu0
        %v1292 = vpop.trf.xlu0
        %v1294 = vsel %vm691, %v1277, 0
        %v1297 = vsel %vm691, %v1278, 0
        %v1300 = vsel %vm691, %v1279, 0
        %v1303 = vsel %vm691, %v1280, 0
        %1305 = vmatprep.subr.mxu0 0.0
        %1306 = vmatpush1.msra.mxu0 0.0
        %1307 = vmatprep.subr.mxu0 0.0
        %1308 = vmatpush1.msra.mxu0 0.0
        %1309 = vmatprep.subr.mxu0 0.0
        %1310 = vmatpush1.msra.mxu0 0.0
        %1311 = vmatprep.subr.mxu0 0.0
        %1312 = vmatpush1.msra.mxu0 0.0
        %1313 = vmatprep.subr.mxu0 0.0
        %1314 = vmatpush1.msra.mxu0 0.0
        %1315 = vmatprep.subr.mxu0 0.0
        %1316 = vmatpush1.msra.mxu0 0.0
        %1317 = vmatprep.subr.mxu0 0.0
        %1318 = vmatpush1.msra.mxu0 0.0
        %1319 = vmatprep.subr.mxu0 0.0
        %1320 = vmatpush1.msra.mxu0 0.0
        %1321 = vmatprep.subr.mxu0 0.0
        %1322 = vmatpush1.msra.mxu0 0.0
        %1323 = vmatprep.subr.mxu0 0.0
        %1324 = vmatpush1.msra.mxu0 0.0
        %1325 = vmatprep.subr.mxu0 0.0
        %1326 = vmatpush1.msra.mxu0 0.0
        %1327 = vmatprep.subr.mxu0 0.0
        %1328 = vmatpush1.msra.mxu0 0.0
        %1329 = vmatprep.subr.mxu0 %v912
        %1330 = vmatpush1.msra.mxu0 %v910
        %1331 = vmatprep.subr.mxu0 %v906
        %1332 = vmatpush1.msra.mxu0 %v904
        %1333 = vmatprep.subr.mxu0 %v900
        %1334 = vmatpush1.msra.mxu0 %v898
        %1335 = vmatprep.subr.mxu0 %v894
        %1336 = vmatpush1.msra.mxu0 %v892
        %1337 = vmatprep.subr.mxu0 0.0
        %1338 = vmatpush2.msra.mxu0 0.0
        %1339 = vmatprep.subr.mxu0 0.0
        %1340 = vmatpush2.msra.mxu0 0.0
        %1341 = vmatprep.subr.mxu0 0.0
        %1342 = vmatpush2.msra.mxu0 0.0
        %1343 = vmatprep.subr.mxu0 0.0
        %1344 = vmatpush2.msra.mxu0 0.0
        %1345 = vmatprep.subr.mxu0 0.0
        %1346 = vmatpush2.msra.mxu0 0.0
        %1347 = vmatprep.subr.mxu0 0.0
        %1348 = vmatpush2.msra.mxu0 0.0
        %1349 = vmatprep.subr.mxu0 0.0
        %1350 = vmatpush2.msra.mxu0 0.0
        %1351 = vmatprep.subr.mxu0 0.0
        %1352 = vmatpush2.msra.mxu0 0.0
        %1353 = vmatprep.subr.mxu0 0.0
        %1354 = vmatpush2.msra.mxu0 0.0
        %1355 = vmatprep.subr.mxu0 0.0
        %1356 = vmatpush2.msra.mxu0 0.0
        %1357 = vmatprep.subr.mxu0 0.0
        %1358 = vmatpush2.msra.mxu0 0.0
        %1359 = vmatprep.subr.mxu0 0.0
        %1360 = vmatpush2.msra.mxu0 0.0
        %1361 = vmatprep.subr.mxu0 0.0
        %1362 = vmatpush2.msra.mxu0 0.0
        %1363 = vmatprep.subr.mxu0 0.0
        %1364 = vmatpush2.msra.mxu0 0.0
        %1365 = vmatprep.subr.mxu0 0.0
        %1366 = vmatpush2.msra.mxu0 0.0
        %1367 = vmatprep.subr.mxu0 0.0
        %1368 = vmatpush2.msra.mxu0 0.0
        %1369 = vmatprep.mubr.f32.mxu0 0.0
        %1370 = vmatmul.mubr.f32.gmra.mxu0 %v1294
        %v1371 = vpop.f32.mrf.mxu0
        %v1372 = vadd.f32 0.0, %v1371
        %v1373 = vpop.f32.mrf.mxu0
        %v1374 = vadd.f32 0.0, %v1373
        %1375 = vmatprep.mubr.f32.mxu0 0.0
        %1376 = vmatmul.mubr.f32.gmra.mxu0 %v1297
        %v1377 = vpop.f32.mrf.mxu0
        %v1378 = vadd.f32 0.0, %v1377
        %v1379 = vpop.f32.mrf.mxu0
        %v1380 = vadd.f32 0.0, %v1379
        %1381 = vmatprep.mubr.f32.mxu0 0.0
        %1382 = vmatmul.mubr.f32.gmra.mxu0 %v1300
        %v1383 = vpop.f32.mrf.mxu0
        %v1384 = vadd.f32 0.0, %v1383
        %v1385 = vpop.f32.mrf.mxu0
        %v1386 = vadd.f32 0.0, %v1385
        %1387 = vmatprep.mubr.f32.mxu0 0.0
        %1388 = vmatmul.mubr.f32.gmra.mxu0 %v1303
        %v1389 = vpop.f32.mrf.mxu0
        %v1390 = vadd.f32 0.0, %v1389
        %v1391 = vpop.f32.mrf.mxu0
        %v1392 = vadd.f32 0.0, %v1391
        %1393 = vdwg.mxu0
        %1394 = vst [vmem:[#allocation2 + $0x40] sm:$0xff] %v1372
        %1395 = vst [vmem:[#allocation2 + $0x48] sm:$0xff] %v1374
        %1396 = vst [vmem:[#allocation2 + $0x50] sm:$0xff] %v1378
        %1397 = vst [vmem:[#allocation2 + $0x58] sm:$0xff] %v1380
        %1398 = vst [vmem:[#allocation2 + $0x60] sm:$0xff] %v1384
        %1399 = vst [vmem:[#allocation2 + $0x68] sm:$0xff] %v1386
        %1400 = vst [vmem:[#allocation2 + $0x70] sm:$0xff] %v1390
        %1401 = vst [vmem:[#allocation2 + $0x78] sm:$0xff] %v1392
        %v1402 = vld [vmem:[%s1 + $0x40] sm:$0xff]
        %v1403 = vld [vmem:[%s1 + $0x48] sm:$0xff]
        %v1404 = vld [vmem:[%s1 + $0x50] sm:$0xff]
        %v1405 = vld [vmem:[%s1 + $0x58] sm:$0xff]
        %v1406 = vld [vmem:[%s1 + $0xc0] sm:$0xff]
        %v1407 = vld [vmem:[%s1 + $0xc8] sm:$0xff]
        %v1408 = vld [vmem:[%s1 + $0xd0] sm:$0xff]
        %v1409 = vld [vmem:[%s1 + $0xd8] sm:$0xff]
        %v1410 = vld [vmem:[%s1 + $0x140] sm:$0xff]
        %v1411 = vld [vmem:[%s1 + $0x148] sm:$0xff]
        %v1412 = vld [vmem:[%s1 + $0x150] sm:$0xff]
        %v1413 = vld [vmem:[%s1 + $0x158] sm:$0xff]
        %v1415 = vsel %vm210, %v1402, 0
        %v1418 = vsel %vm210, %v1403, 0
        %v1421 = vsel %vm210, %v1404, 0
        %v1424 = vsel %vm210, %v1405, 0
        %1426 = vmatprep.subr.mxu0 0.0
        %1427 = vmatpush1.msra.mxu0 0.0
        %1428 = vmatprep.subr.mxu0 0.0
        %1429 = vmatpush1.msra.mxu0 0.0
        %1430 = vmatprep.subr.mxu0 0.0
        %1431 = vmatpush1.msra.mxu0 0.0
        %1432 = vmatprep.subr.mxu0 0.0
        %1433 = vmatpush1.msra.mxu0 0.0
        %1434 = vmatprep.subr.mxu0 0.0
        %1435 = vmatpush1.msra.mxu0 0.0
        %1436 = vmatprep.subr.mxu0 0.0
        %1437 = vmatpush1.msra.mxu0 0.0
        %1438 = vmatprep.subr.mxu0 0.0
        %1439 = vmatpush1.msra.mxu0 0.0
        %1440 = vmatprep.subr.mxu0 0.0
        %1441 = vmatpush1.msra.mxu0 0.0
        %1442 = vmatprep.subr.mxu0 0.0
        %1443 = vmatpush1.msra.mxu0 0.0
        %1444 = vmatprep.subr.mxu0 0.0
        %1445 = vmatpush1.msra.mxu0 0.0
        %1446 = vmatprep.subr.mxu0 0.0
        %1447 = vmatpush1.msra.mxu0 0.0
        %1448 = vmatprep.subr.mxu0 0.0
        %1449 = vmatpush1.msra.mxu0 0.0
        %1450 = vmatprep.subr.mxu0 0.0
        %1451 = vmatpush1.msra.mxu0 0.0
        %1452 = vmatprep.subr.mxu0 0.0
        %1453 = vmatpush1.msra.mxu0 0.0
        %1454 = vmatprep.subr.mxu0 0.0
        %1455 = vmatpush1.msra.mxu0 0.0
        %1456 = vmatprep.subr.mxu0 %v197
        %1457 = vmatpush1.msra.mxu0 %v196
        %1458 = vmatprep.subr.mxu0 0.0
        %1459 = vmatpush2.msra.mxu0 0.0
        %1460 = vmatprep.subr.mxu0 0.0
        %1461 = vmatpush2.msra.mxu0 0.0
        %1462 = vmatprep.subr.mxu0 0.0
        %1463 = vmatpush2.msra.mxu0 0.0
        %1464 = vmatprep.subr.mxu0 0.0
        %1465 = vmatpush2.msra.mxu0 0.0
        %1466 = vmatprep.subr.mxu0 0.0
        %1467 = vmatpush2.msra.mxu0 0.0
        %1468 = vmatprep.subr.mxu0 0.0
        %1469 = vmatpush2.msra.mxu0 0.0
        %1470 = vmatprep.subr.mxu0 0.0
        %1471 = vmatpush2.msra.mxu0 0.0
        %1472 = vmatprep.subr.mxu0 0.0
        %1473 = vmatpush2.msra.mxu0 0.0
        %1474 = vmatprep.subr.mxu0 0.0
        %1475 = vmatpush2.msra.mxu0 0.0
        %1476 = vmatprep.subr.mxu0 0.0
        %1477 = vmatpush2.msra.mxu0 0.0
        %1478 = vmatprep.subr.mxu0 0.0
        %1479 = vmatpush2.msra.mxu0 0.0
        %1480 = vmatprep.subr.mxu0 0.0
        %1481 = vmatpush2.msra.mxu0 0.0
        %1482 = vmatprep.subr.mxu0 0.0
        %1483 = vmatpush2.msra.mxu0 0.0
        %1484 = vmatprep.subr.mxu0 0.0
        %1485 = vmatpush2.msra.mxu0 0.0
        %1486 = vmatprep.subr.mxu0 0.0
        %1487 = vmatpush2.msra.mxu0 0.0
        %1488 = vmatprep.subr.mxu0 0.0
        %1489 = vmatpush2.msra.mxu0 0.0
        %1490 = vmatprep.mubr.f32.mxu0 0.0
        %1491 = vmatmul.mubr.f32.gmra.mxu0 %v1415
        %v1492 = vpop.f32.mrf.mxu0
        %v1493 = vadd.f32 0.0, %v1492
        %v1494 = vpop.f32.mrf.mxu0
        %v1495 = vadd.f32 0.0, %v1494
        %1496 = vmatprep.mubr.f32.mxu0 0.0
        %1497 = vmatmul.mubr.f32.gmra.mxu0 %v1418
        %v1498 = vpop.f32.mrf.mxu0
        %v1499 = vadd.f32 0.0, %v1498
        %v1500 = vpop.f32.mrf.mxu0
        %v1501 = vadd.f32 0.0, %v1500
        %1502 = vmatprep.mubr.f32.mxu0 0.0
        %1503 = vmatmul.mubr.f32.gmra.mxu0 %v1421
        %v1504 = vpop.f32.mrf.mxu0
        %v1505 = vadd.f32 0.0, %v1504
        %v1506 = vpop.f32.mrf.mxu0
        %v1507 = vadd.f32 0.0, %v1506
        %1508 = vmatprep.mubr.f32.mxu0 0.0
        %1509 = vmatmul.mubr.f32.gmra.mxu0 %v1424
        %v1510 = vpop.f32.mrf.mxu0
        %v1511 = vadd.f32 0.0, %v1510
        %v1512 = vpop.f32.mrf.mxu0
        %v1513 = vadd.f32 0.0, %v1512
        %1514 = vdwg.mxu0
        %v1516 = vsel %vm210, %v1406, 0
        %v1519 = vsel %vm210, %v1407, 0
        %v1522 = vsel %vm210, %v1408, 0
        %v1525 = vsel %vm210, %v1409, 0
        %1527 = vmatprep.subr.mxu0 0.0
        %1528 = vmatpush1.msra.mxu0 0.0
        %1529 = vmatprep.subr.mxu0 0.0
        %1530 = vmatpush1.msra.mxu0 0.0
        %1531 = vmatprep.subr.mxu0 0.0
        %1532 = vmatpush1.msra.mxu0 0.0
        %1533 = vmatprep.subr.mxu0 0.0
        %1534 = vmatpush1.msra.mxu0 0.0
        %1535 = vmatprep.subr.mxu0 0.0
        %1536 = vmatpush1.msra.mxu0 0.0
        %1537 = vmatprep.subr.mxu0 0.0
        %1538 = vmatpush1.msra.mxu0 0.0
        %1539 = vmatprep.subr.mxu0 0.0
        %1540 = vmatpush1.msra.mxu0 0.0
        %1541 = vmatprep.subr.mxu0 0.0
        %1542 = vmatpush1.msra.mxu0 0.0
        %1543 = vmatprep.subr.mxu0 0.0
        %1544 = vmatpush1.msra.mxu0 0.0
        %1545 = vmatprep.subr.mxu0 0.0
        %1546 = vmatpush1.msra.mxu0 0.0
        %1547 = vmatprep.subr.mxu0 0.0
        %1548 = vmatpush1.msra.mxu0 0.0
        %1549 = vmatprep.subr.mxu0 0.0
        %1550 = vmatpush1.msra.mxu0 0.0
        %1551 = vmatprep.subr.mxu0 0.0
        %1552 = vmatpush1.msra.mxu0 0.0
        %1553 = vmatprep.subr.mxu0 0.0
        %1554 = vmatpush1.msra.mxu0 0.0
        %1555 = vmatprep.subr.mxu0 0.0
        %1556 = vmatpush1.msra.mxu0 0.0
        %1557 = vmatprep.subr.mxu0 %v197
        %1558 = vmatpush1.msra.mxu0 %v196
        %1559 = vmatprep.subr.mxu0 0.0
        %1560 = vmatpush2.msra.mxu0 0.0
        %1561 = vmatprep.subr.mxu0 0.0
        %1562 = vmatpush2.msra.mxu0 0.0
        %1563 = vmatprep.subr.mxu0 0.0
        %1564 = vmatpush2.msra.mxu0 0.0
        %1565 = vmatprep.subr.mxu0 0.0
        %1566 = vmatpush2.msra.mxu0 0.0
        %1567 = vmatprep.subr.mxu0 0.0
        %1568 = vmatpush2.msra.mxu0 0.0
        %1569 = vmatprep.subr.mxu0 0.0
        %1570 = vmatpush2.msra.mxu0 0.0
        %1571 = vmatprep.subr.mxu0 0.0
        %1572 = vmatpush2.msra.mxu0 0.0
        %1573 = vmatprep.subr.mxu0 0.0
        %1574 = vmatpush2.msra.mxu0 0.0
        %1575 = vmatprep.subr.mxu0 0.0
        %1576 = vmatpush2.msra.mxu0 0.0
        %1577 = vmatprep.subr.mxu0 0.0
        %1578 = vmatpush2.msra.mxu0 0.0
        %1579 = vmatprep.subr.mxu0 0.0
        %1580 = vmatpush2.msra.mxu0 0.0
        %1581 = vmatprep.subr.mxu0 0.0
        %1582 = vmatpush2.msra.mxu0 0.0
        %1583 = vmatprep.subr.mxu0 0.0
        %1584 = vmatpush2.msra.mxu0 0.0
        %1585 = vmatprep.subr.mxu0 0.0
        %1586 = vmatpush2.msra.mxu0 0.0
        %1587 = vmatprep.subr.mxu0 0.0
        %1588 = vmatpush2.msra.mxu0 0.0
        %1589 = vmatprep.subr.mxu0 0.0
        %1590 = vmatpush2.msra.mxu0 0.0
        %1591 = vmatprep.mubr.f32.mxu0 0.0
        %1592 = vmatmul.mubr.f32.gmra.mxu0 %v1516
        %v1593 = vpop.f32.mrf.mxu0
        %v1594 = vadd.f32 0.0, %v1593
        %v1595 = vpop.f32.mrf.mxu0
        %v1596 = vadd.f32 0.0, %v1595
        %1597 = vmatprep.mubr.f32.mxu0 0.0
        %1598 = vmatmul.mubr.f32.gmra.mxu0 %v1519
        %v1599 = vpop.f32.mrf.mxu0
        %v1600 = vadd.f32 0.0, %v1599
        %v1601 = vpop.f32.mrf.mxu0
        %v1602 = vadd.f32 0.0, %v1601
        %1603 = vmatprep.mubr.f32.mxu0 0.0
        %1604 = vmatmul.mubr.f32.gmra.mxu0 %v1522
        %v1605 = vpop.f32.mrf.mxu0
        %v1606 = vadd.f32 0.0, %v1605
        %v1607 = vpop.f32.mrf.mxu0
        %v1608 = vadd.f32 0.0, %v1607
        %1609 = vmatprep.mubr.f32.mxu0 0.0
        %1610 = vmatmul.mubr.f32.gmra.mxu0 %v1525
        %v1611 = vpop.f32.mrf.mxu0
        %v1612 = vadd.f32 0.0, %v1611
        %v1613 = vpop.f32.mrf.mxu0
        %v1614 = vadd.f32 0.0, %v1613
        %1615 = vdwg.mxu0
        %v1617 = vsel %vm210, %v1410, 0
        %v1620 = vsel %vm210, %v1411, 0
        %v1623 = vsel %vm210, %v1412, 0
        %v1626 = vsel %vm210, %v1413, 0
        %1628 = vmatprep.subr.mxu0 0.0
        %1629 = vmatpush1.msra.mxu0 0.0
        %1630 = vmatprep.subr.mxu0 0.0
        %1631 = vmatpush1.msra.mxu0 0.0
        %1632 = vmatprep.subr.mxu0 0.0
        %1633 = vmatpush1.msra.mxu0 0.0
        %1634 = vmatprep.subr.mxu0 0.0
        %1635 = vmatpush1.msra.mxu0 0.0
        %1636 = vmatprep.subr.mxu0 0.0
        %1637 = vmatpush1.msra.mxu0 0.0
        %1638 = vmatprep.subr.mxu0 0.0
        %1639 = vmatpush1.msra.mxu0 0.0
        %1640 = vmatprep.subr.mxu0 0.0
        %1641 = vmatpush1.msra.mxu0 0.0
        %1642 = vmatprep.subr.mxu0 0.0
        %1643 = vmatpush1.msra.mxu0 0.0
        %1644 = vmatprep.subr.mxu0 0.0
        %1645 = vmatpush1.msra.mxu0 0.0
        %1646 = vmatprep.subr.mxu0 0.0
        %1647 = vmatpush1.msra.mxu0 0.0
        %1648 = vmatprep.subr.mxu0 0.0
        %1649 = vmatpush1.msra.mxu0 0.0
        %1650 = vmatprep.subr.mxu0 0.0
        %1651 = vmatpush1.msra.mxu0 0.0
        %1652 = vmatprep.subr.mxu0 0.0
        %1653 = vmatpush1.msra.mxu0 0.0
        %1654 = vmatprep.subr.mxu0 0.0
        %1655 = vmatpush1.msra.mxu0 0.0
        %1656 = vmatprep.subr.mxu0 0.0
        %1657 = vmatpush1.msra.mxu0 0.0
        %1658 = vmatprep.subr.mxu0 %v197
        %1659 = vmatpush1.msra.mxu0 %v196
        %1660 = vmatprep.subr.mxu0 0.0
        %1661 = vmatpush2.msra.mxu0 0.0
        %1662 = vmatprep.subr.mxu0 0.0
        %1663 = vmatpush2.msra.mxu0 0.0
        %1664 = vmatprep.subr.mxu0 0.0
        %1665 = vmatpush2.msra.mxu0 0.0
        %1666 = vmatprep.subr.mxu0 0.0
        %1667 = vmatpush2.msra.mxu0 0.0
        %1668 = vmatprep.subr.mxu0 0.0
        %1669 = vmatpush2.msra.mxu0 0.0
        %1670 = vmatprep.subr.mxu0 0.0
        %1671 = vmatpush2.msra.mxu0 0.0
        %1672 = vmatprep.subr.mxu0 0.0
        %1673 = vmatpush2.msra.mxu0 0.0
        %1674 = vmatprep.subr.mxu0 0.0
        %1675 = vmatpush2.msra.mxu0 0.0
        %1676 = vmatprep.subr.mxu0 0.0
        %1677 = vmatpush2.msra.mxu0 0.0
        %1678 = vmatprep.subr.mxu0 0.0
        %1679 = vmatpush2.msra.mxu0 0.0
        %1680 = vmatprep.subr.mxu0 0.0
        %1681 = vmatpush2.msra.mxu0 0.0
        %1682 = vmatprep.subr.mxu0 0.0
        %1683 = vmatpush2.msra.mxu0 0.0
        %1684 = vmatprep.subr.mxu0 0.0
        %1685 = vmatpush2.msra.mxu0 0.0
        %1686 = vmatprep.subr.mxu0 0.0
        %1687 = vmatpush2.msra.mxu0 0.0
        %1688 = vmatprep.subr.mxu0 0.0
        %1689 = vmatpush2.msra.mxu0 0.0
        %1690 = vmatprep.subr.mxu0 0.0
        %1691 = vmatpush2.msra.mxu0 0.0
        %1692 = vmatprep.mubr.f32.mxu0 0.0
        %1693 = vmatmul.mubr.f32.gmra.mxu0 %v1617
        %v1694 = vpop.f32.mrf.mxu0
        %v1695 = vadd.f32 0.0, %v1694
        %v1696 = vpop.f32.mrf.mxu0
        %v1697 = vadd.f32 0.0, %v1696
        %1698 = vmatprep.mubr.f32.mxu0 0.0
        %1699 = vmatmul.mubr.f32.gmra.mxu0 %v1620
        %v1700 = vpop.f32.mrf.mxu0
        %v1701 = vadd.f32 0.0, %v1700
        %v1702 = vpop.f32.mrf.mxu0
        %v1703 = vadd.f32 0.0, %v1702
        %1704 = vmatprep.mubr.f32.mxu0 0.0
        %1705 = vmatmul.mubr.f32.gmra.mxu0 %v1623
        %v1706 = vpop.f32.mrf.mxu0
        %v1707 = vadd.f32 0.0, %v1706
        %v1708 = vpop.f32.mrf.mxu0
        %v1709 = vadd.f32 0.0, %v1708
        %1710 = vmatprep.mubr.f32.mxu0 0.0
        %1711 = vmatmul.mubr.f32.gmra.mxu0 %v1626
        %v1712 = vpop.f32.mrf.mxu0
        %v1713 = vadd.f32 0.0, %v1712
        %v1714 = vpop.f32.mrf.mxu0
        %v1715 = vadd.f32 0.0, %v1714
        %1716 = vdwg.mxu0
        %v1717 = vmax.f32 %v1594, %v1596
        %1718 = vmax.xlane.f32.xlu0 %v1717
        %v1719 = vpop.xlane.xlu0 %1718
        %v1720 = vmax.f32 %v1600, %v1602
        %1721 = vmax.xlane.f32.xlu0 %v1720
        %v1722 = vpop.xlane.xlu0 %1721
        %v1723 = vmax.f32 %v1606, %v1608
        %1724 = vmax.xlane.f32.xlu0 %v1723
        %v1725 = vpop.xlane.xlu0 %1724
        %v1726 = vmax.f32 %v1612, %v1614
        %1727 = vmax.xlane.f32.xlu0 %v1726
        %v1728 = vpop.xlane.xlu0 %1727
        %v1729 = vsub.f32 %v1594, %v1719
        %v1730 = vsub.f32 %v1596, %v1719
        %v1731 = vsub.f32 %v1600, %v1722
        %v1732 = vsub.f32 %v1602, %v1722
        %v1733 = vsub.f32 %v1606, %v1725
        %v1734 = vsub.f32 %v1608, %v1725
        %v1735 = vsub.f32 %v1612, %v1728
        %v1736 = vsub.f32 %v1614, %v1728
        %v1737 = vmul.f32 %v1729, 1.442695
        %v1738 = vpow.pop %v1737
        %v1739 = vmul.f32 %v1730, 1.442695
        %v1740 = vpow.pop %v1739
        %v1741 = vmul.f32 %v1731, 1.442695
        %v1742 = vpow.pop %v1741
        %v1743 = vmul.f32 %v1732, 1.442695
        %v1744 = vpow.pop %v1743
        %v1745 = vmul.f32 %v1733, 1.442695
        %v1746 = vpow.pop %v1745
        %v1747 = vmul.f32 %v1734, 1.442695
        %v1748 = vpow.pop %v1747
        %v1749 = vmul.f32 %v1735, 1.442695
        %v1750 = vpow.pop %v1749
        %v1751 = vmul.f32 %v1736, 1.442695
        %v1752 = vpow.pop %v1751
        %v1753 = vadd.f32 %v1738, %v1740
        %1754 = vadd.xlane.f32.xlu0 %v1753
        %v1755 = vpop.xlane.xlu0 %1754
        %v1756 = vadd.f32 %v1742, %v1744
        %1757 = vadd.xlane.f32.xlu0 %v1756
        %v1758 = vpop.xlane.xlu0 %1757
        %v1759 = vadd.f32 %v1746, %v1748
        %1760 = vadd.xlane.f32.xlu0 %v1759
        %v1761 = vpop.xlane.xlu0 %1760
        %v1762 = vadd.f32 %v1750, %v1752
        %1763 = vadd.xlane.f32.xlu0 %v1762
        %v1764 = vpop.xlane.xlu0 %1763
        %v1765 = vrcp.pop %v1755
        %v1766 = vmul.f32 %v1738, %v1765
        %v1767 = vmul.f32 %v1740, %v1765
        %v1768 = vrcp.pop %v1758
        %v1769 = vmul.f32 %v1742, %v1768
        %v1770 = vmul.f32 %v1744, %v1768
        %v1771 = vrcp.pop %v1761
        %v1772 = vmul.f32 %v1746, %v1771
        %v1773 = vmul.f32 %v1748, %v1771
        %v1774 = vrcp.pop %v1764
        %v1775 = vmul.f32 %v1750, %v1774
        %v1776 = vmul.f32 %v1752, %v1774
        %1777 = vmatprep.subr.mxu0 0.0
        %1778 = vmatpush1.xpose.msra.mxu0 0.0
        %1779 = vmatprep.subr.mxu0 0.0
        %1780 = vmatpush1.xpose.msra.mxu0 0.0
        %1781 = vmatprep.subr.mxu0 0.0
        %1782 = vmatpush1.xpose.msra.mxu0 0.0
        %1783 = vmatprep.subr.mxu0 0.0
        %1784 = vmatpush1.xpose.msra.mxu0 0.0
        %1785 = vmatprep.subr.mxu0 0.0
        %1786 = vmatpush1.xpose.msra.mxu0 0.0
        %1787 = vmatprep.subr.mxu0 0.0
        %1788 = vmatpush1.xpose.msra.mxu0 0.0
        %1789 = vmatprep.subr.mxu0 0.0
        %1790 = vmatpush1.xpose.msra.mxu0 0.0
        %1791 = vmatprep.subr.mxu0 0.0
        %1792 = vmatpush1.xpose.msra.mxu0 0.0
        %1793 = vmatprep.subr.mxu0 0.0
        %1794 = vmatpush1.xpose.msra.mxu0 0.0
        %1795 = vmatprep.subr.mxu0 0.0
        %1796 = vmatpush1.xpose.msra.mxu0 0.0
        %1797 = vmatprep.subr.mxu0 0.0
        %1798 = vmatpush1.xpose.msra.mxu0 0.0
        %1799 = vmatprep.subr.mxu0 0.0
        %1800 = vmatpush1.xpose.msra.mxu0 0.0
        %1801 = vmatprep.subr.mxu0 %v1715
        %1802 = vmatpush1.xpose.msra.mxu0 %v1713
        %1803 = vmatprep.subr.mxu0 %v1709
        %1804 = vmatpush1.xpose.msra.mxu0 %v1707
        %1805 = vmatprep.subr.mxu0 %v1703
        %1806 = vmatpush1.xpose.msra.mxu0 %v1701
        %1807 = vmatprep.subr.mxu0 %v1697
        %1808 = vmatpush1.xpose.msra.mxu0 %v1695
        %1809 = vmatprep.subr.mxu0 0.0
        %1810 = vmatpush2.xpose.msra.mxu0 0.0
        %1811 = vmatprep.subr.mxu0 0.0
        %1812 = vmatpush2.xpose.msra.mxu0 0.0
        %1813 = vmatprep.subr.mxu0 0.0
        %1814 = vmatpush2.xpose.msra.mxu0 0.0
        %1815 = vmatprep.subr.mxu0 0.0
        %1816 = vmatpush2.xpose.msra.mxu0 0.0
        %1817 = vmatprep.subr.mxu0 0.0
        %1818 = vmatpush2.xpose.msra.mxu0 0.0
        %1819 = vmatprep.subr.mxu0 0.0
        %1820 = vmatpush2.xpose.msra.mxu0 0.0
        %1821 = vmatprep.subr.mxu0 0.0
        %1822 = vmatpush2.xpose.msra.mxu0 0.0
        %1823 = vmatprep.subr.mxu0 0.0
        %1824 = vmatpush2.xpose.msra.mxu0 0.0
        %1825 = vmatprep.subr.mxu0 0.0
        %1826 = vmatpush2.xpose.msra.mxu0 0.0
        %1827 = vmatprep.subr.mxu0 0.0
        %1828 = vmatpush2.xpose.msra.mxu0 0.0
        %1829 = vmatprep.subr.mxu0 0.0
        %1830 = vmatpush2.xpose.msra.mxu0 0.0
        %1831 = vmatprep.subr.mxu0 0.0
        %1832 = vmatpush2.xpose.msra.mxu0 0.0
        %1833 = vmatprep.subr.mxu0 0.0
        %1834 = vmatpush2.xpose.msra.mxu0 0.0
        %1835 = vmatprep.subr.mxu0 0.0
        %1836 = vmatpush2.xpose.msra.mxu0 0.0
        %1837 = vmatprep.subr.mxu0 0.0
        %1838 = vmatpush2.xpose.msra.mxu0 0.0
        %1839 = vmatprep.subr.mxu0 0.0
        %1840 = vmatpush2.xpose.msra.mxu0 0.0
        %1841 = vmatprep.mubr.f32.mxu0 %v1767
        %1842 = vmatmul.mubr.f32.gmra.mxu0 %v1766
        %v1843 = vpop.f32.mrf.mxu0
        %v1844 = vadd.f32 0.0, %v1843
        %v1845 = vpop.f32.mrf.mxu0
        %1846 = vmatprep.mubr.f32.mxu0 %v1770
        %1847 = vmatmul.mubr.f32.gmra.mxu0 %v1769
        %v1848 = vpop.f32.mrf.mxu0
        %v1849 = vadd.f32 0.0, %v1848
        %v1850 = vpop.f32.mrf.mxu0
        %1851 = vmatprep.mubr.f32.mxu0 %v1773
        %1852 = vmatmul.mubr.f32.gmra.mxu0 %v1772
        %v1853 = vpop.f32.mrf.mxu0
        %v1854 = vadd.f32 0.0, %v1853
        %v1855 = vpop.f32.mrf.mxu0
        %1856 = vmatprep.mubr.f32.mxu0 %v1776
        %1857 = vmatmul.mubr.f32.gmra.mxu0 %v1775
        %v1858 = vpop.f32.mrf.mxu0
        %v1859 = vadd.f32 0.0, %v1858
        %v1860 = vpop.f32.mrf.mxu0
        %1861 = vdwg.mxu0
        %1862 = vxpose.xlu0.b32.start [1/16] %v1844, 128
        %1863 = vxpose.xlu0.b32.cont [2/16] %v1849, 128
        %1864 = vxpose.xlu0.b32.cont [3/16] %v1854, 128
        %1865 = vxpose.xlu0.b32.cont [4/16] %v1859, 128
        %1866 = vxpose.xlu0.b32.cont [5/16] 0.0, 128
        %1867 = vxpose.xlu0.b32.cont [6/16] 0.0, 128
        %1868 = vxpose.xlu0.b32.cont [7/16] 0.0, 128
        %1869 = vxpose.xlu0.b32.cont [8/16] 0.0, 128
        %1870 = vxpose.xlu0.b32.cont [9/16] 0.0, 128
        %1871 = vxpose.xlu0.b32.cont [10/16] 0.0, 128
        %1872 = vxpose.xlu0.b32.cont [11/16] 0.0, 128
        %1873 = vxpose.xlu0.b32.cont [12/16] 0.0, 128
        %1874 = vxpose.xlu0.b32.cont [13/16] 0.0, 128
        %1875 = vxpose.xlu0.b32.cont [14/16] 0.0, 128
        %1876 = vxpose.xlu0.b32.cont [15/16] 0.0, 128
        %1877 = vxpose.xlu0.b32.end [16/16] 0.0, 128
        %v1878 = vpop.trf.xlu0
        %v1879 = vpop.trf.xlu0
        %v1880 = vpop.trf.xlu0
        %v1881 = vpop.trf.xlu0
        %v1882 = vpop.trf.xlu0
        %v1883 = vpop.trf.xlu0
        %v1884 = vpop.trf.xlu0
        %v1885 = vpop.trf.xlu0
        %v1886 = vpop.trf.xlu0
        %v1887 = vpop.trf.xlu0
        %v1888 = vpop.trf.xlu0
        %v1889 = vpop.trf.xlu0
        %v1890 = vpop.trf.xlu0
        %v1891 = vpop.trf.xlu0
        %v1892 = vpop.trf.xlu0
        %v1893 = vpop.trf.xlu0
        %v1895 = vsel %vm691, %v1878, 0
        %v1898 = vsel %vm691, %v1879, 0
        %v1901 = vsel %vm691, %v1880, 0
        %v1904 = vsel %vm691, %v1881, 0
        %1906 = vmatprep.subr.mxu0 0.0
        %1907 = vmatpush1.msra.mxu0 0.0
        %1908 = vmatprep.subr.mxu0 0.0
        %1909 = vmatpush1.msra.mxu0 0.0
        %1910 = vmatprep.subr.mxu0 0.0
        %1911 = vmatpush1.msra.mxu0 0.0
        %1912 = vmatprep.subr.mxu0 0.0
        %1913 = vmatpush1.msra.mxu0 0.0
        %1914 = vmatprep.subr.mxu0 0.0
        %1915 = vmatpush1.msra.mxu0 0.0
        %1916 = vmatprep.subr.mxu0 0.0
        %1917 = vmatpush1.msra.mxu0 0.0
        %1918 = vmatprep.subr.mxu0 0.0
        %1919 = vmatpush1.msra.mxu0 0.0
        %1920 = vmatprep.subr.mxu0 0.0
        %1921 = vmatpush1.msra.mxu0 0.0
        %1922 = vmatprep.subr.mxu0 0.0
        %1923 = vmatpush1.msra.mxu0 0.0
        %1924 = vmatprep.subr.mxu0 0.0
        %1925 = vmatpush1.msra.mxu0 0.0
        %1926 = vmatprep.subr.mxu0 0.0
        %1927 = vmatpush1.msra.mxu0 0.0
        %1928 = vmatprep.subr.mxu0 0.0
        %1929 = vmatpush1.msra.mxu0 0.0
        %1930 = vmatprep.subr.mxu0 %v1513
        %1931 = vmatpush1.msra.mxu0 %v1511
        %1932 = vmatprep.subr.mxu0 %v1507
        %1933 = vmatpush1.msra.mxu0 %v1505
        %1934 = vmatprep.subr.mxu0 %v1501
        %1935 = vmatpush1.msra.mxu0 %v1499
        %1936 = vmatprep.subr.mxu0 %v1495
        %1937 = vmatpush1.msra.mxu0 %v1493
        %1938 = vmatprep.subr.mxu0 0.0
        %1939 = vmatpush2.msra.mxu0 0.0
        %1940 = vmatprep.subr.mxu0 0.0
        %1941 = vmatpush2.msra.mxu0 0.0
        %1942 = vmatprep.subr.mxu0 0.0
        %1943 = vmatpush2.msra.mxu0 0.0
        %1944 = vmatprep.subr.mxu0 0.0
        %1945 = vmatpush2.msra.mxu0 0.0
        %1946 = vmatprep.subr.mxu0 0.0
        %1947 = vmatpush2.msra.mxu0 0.0
        %1948 = vmatprep.subr.mxu0 0.0
        %1949 = vmatpush2.msra.mxu0 0.0
        %1950 = vmatprep.subr.mxu0 0.0
        %1951 = vmatpush2.msra.mxu0 0.0
        %1952 = vmatprep.subr.mxu0 0.0
        %1953 = vmatpush2.msra.mxu0 0.0
        %1954 = vmatprep.subr.mxu0 0.0
        %1955 = vmatpush2.msra.mxu0 0.0
        %1956 = vmatprep.subr.mxu0 0.0
        %1957 = vmatpush2.msra.mxu0 0.0
        %1958 = vmatprep.subr.mxu0 0.0
        %1959 = vmatpush2.msra.mxu0 0.0
        %1960 = vmatprep.subr.mxu0 0.0
        %1961 = vmatpush2.msra.mxu0 0.0
        %1962 = vmatprep.subr.mxu0 0.0
        %1963 = vmatpush2.msra.mxu0 0.0
        %1964 = vmatprep.subr.mxu0 0.0
        %1965 = vmatpush2.msra.mxu0 0.0
        %1966 = vmatprep.subr.mxu0 0.0
        %1967 = vmatpush2.msra.mxu0 0.0
        %1968 = vmatprep.subr.mxu0 0.0
        %1969 = vmatpush2.msra.mxu0 0.0
        %1970 = vmatprep.mubr.f32.mxu0 0.0
        %1971 = vmatmul.mubr.f32.gmra.mxu0 %v1895
        %v1972 = vpop.f32.mrf.mxu0
        %v1973 = vadd.f32 0.0, %v1972
        %v1974 = vpop.f32.mrf.mxu0
        %v1975 = vadd.f32 0.0, %v1974
        %1976 = vmatprep.mubr.f32.mxu0 0.0
        %1977 = vmatmul.mubr.f32.gmra.mxu0 %v1898
        %v1978 = vpop.f32.mrf.mxu0
        %v1979 = vadd.f32 0.0, %v1978
        %v1980 = vpop.f32.mrf.mxu0
        %v1981 = vadd.f32 0.0, %v1980
        %1982 = vmatprep.mubr.f32.mxu0 0.0
        %1983 = vmatmul.mubr.f32.gmra.mxu0 %v1901
        %v1984 = vpop.f32.mrf.mxu0
        %v1985 = vadd.f32 0.0, %v1984
        %v1986 = vpop.f32.mrf.mxu0
        %v1987 = vadd.f32 0.0, %v1986
        %1988 = vmatprep.mubr.f32.mxu0 0.0
        %1989 = vmatmul.mubr.f32.gmra.mxu0 %v1904
        %v1990 = vpop.f32.mrf.mxu0
        %v1991 = vadd.f32 0.0, %v1990
        %v1992 = vpop.f32.mrf.mxu0
        %v1993 = vadd.f32 0.0, %v1992
        %1994 = vdwg.mxu0
        %1995 = vst [vmem:[#allocation2 + $0x80] sm:$0xff] %v1973
        %1996 = vst [vmem:[#allocation2 + $0x88] sm:$0xff] %v1975
        %1997 = vst [vmem:[#allocation2 + $0x90] sm:$0xff] %v1979
        %1998 = vst [vmem:[#allocation2 + $0x98] sm:$0xff] %v1981
        %1999 = vst [vmem:[#allocation2 + $0xa0] sm:$0xff] %v1985
        %2000 = vst [vmem:[#allocation2 + $0xa8] sm:$0xff] %v1987
        %2001 = vst [vmem:[#allocation2 + $0xb0] sm:$0xff] %v1991
        %2002 = vst [vmem:[#allocation2 + $0xb8] sm:$0xff] %v1993
        %v2003 = vld [vmem:[%s1 + $0x60] sm:$0xff]
        %v2004 = vld [vmem:[%s1 + $0x68] sm:$0xff]
        %v2005 = vld [vmem:[%s1 + $0x70] sm:$0xff]
        %v2006 = vld [vmem:[%s1 + $0x78] sm:$0xff]
        %v2007 = vld [vmem:[%s1 + $0xe0] sm:$0xff]
        %v2008 = vld [vmem:[%s1 + $0xe8] sm:$0xff]
        %v2009 = vld [vmem:[%s1 + $0xf0] sm:$0xff]
        %v2010 = vld [vmem:[%s1 + $0xf8] sm:$0xff]
        %v2011 = vld [vmem:[%s1 + $0x160] sm:$0xff]
        %v2012 = vld [vmem:[%s1 + $0x168] sm:$0xff]
        %v2013 = vld [vmem:[%s1 + $0x170] sm:$0xff]
        %v2014 = vld [vmem:[%s1 + $0x178] sm:$0xff]
        %v2016 = vsel %vm210, %v2003, 0
        %v2019 = vsel %vm210, %v2004, 0
        %v2022 = vsel %vm210, %v2005, 0
        %v2025 = vsel %vm210, %v2006, 0
        %2027 = vmatprep.subr.mxu0 0.0
        %2028 = vmatpush1.msra.mxu0 0.0
        %2029 = vmatprep.subr.mxu0 0.0
        %2030 = vmatpush1.msra.mxu0 0.0
        %2031 = vmatprep.subr.mxu0 0.0
        %2032 = vmatpush1.msra.mxu0 0.0
        %2033 = vmatprep.subr.mxu0 0.0
        %2034 = vmatpush1.msra.mxu0 0.0
        %2035 = vmatprep.subr.mxu0 0.0
        %2036 = vmatpush1.msra.mxu0 0.0
        %2037 = vmatprep.subr.mxu0 0.0
        %2038 = vmatpush1.msra.mxu0 0.0
        %2039 = vmatprep.subr.mxu0 0.0
        %2040 = vmatpush1.msra.mxu0 0.0
        %2041 = vmatprep.subr.mxu0 0.0
        %2042 = vmatpush1.msra.mxu0 0.0
        %2043 = vmatprep.subr.mxu0 0.0
        %2044 = vmatpush1.msra.mxu0 0.0
        %2045 = vmatprep.subr.mxu0 0.0
        %2046 = vmatpush1.msra.mxu0 0.0
        %2047 = vmatprep.subr.mxu0 0.0
        %2048 = vmatpush1.msra.mxu0 0.0
        %2049 = vmatprep.subr.mxu0 0.0
        %2050 = vmatpush1.msra.mxu0 0.0
        %2051 = vmatprep.subr.mxu0 0.0
        %2052 = vmatpush1.msra.mxu0 0.0
        %2053 = vmatprep.subr.mxu0 0.0
        %2054 = vmatpush1.msra.mxu0 0.0
        %2055 = vmatprep.subr.mxu0 0.0
        %2056 = vmatpush1.msra.mxu0 0.0
        %2057 = vmatprep.subr.mxu0 %v197
        %2058 = vmatpush1.msra.mxu0 %v196
        %2059 = vmatprep.subr.mxu0 0.0
        %2060 = vmatpush2.msra.mxu0 0.0
        %2061 = vmatprep.subr.mxu0 0.0
        %2062 = vmatpush2.msra.mxu0 0.0
        %2063 = vmatprep.subr.mxu0 0.0
        %2064 = vmatpush2.msra.mxu0 0.0
        %2065 = vmatprep.subr.mxu0 0.0
        %2066 = vmatpush2.msra.mxu0 0.0
        %2067 = vmatprep.subr.mxu0 0.0
        %2068 = vmatpush2.msra.mxu0 0.0
        %2069 = vmatprep.subr.mxu0 0.0
        %2070 = vmatpush2.msra.mxu0 0.0
        %2071 = vmatprep.subr.mxu0 0.0
        %2072 = vmatpush2.msra.mxu0 0.0
        %2073 = vmatprep.subr.mxu0 0.0
        %2074 = vmatpush2.msra.mxu0 0.0
        %2075 = vmatprep.subr.mxu0 0.0
        %2076 = vmatpush2.msra.mxu0 0.0
        %2077 = vmatprep.subr.mxu0 0.0
        %2078 = vmatpush2.msra.mxu0 0.0
        %2079 = vmatprep.subr.mxu0 0.0
        %2080 = vmatpush2.msra.mxu0 0.0
        %2081 = vmatprep.subr.mxu0 0.0
        %2082 = vmatpush2.msra.mxu0 0.0
        %2083 = vmatprep.subr.mxu0 0.0
        %2084 = vmatpush2.msra.mxu0 0.0
        %2085 = vmatprep.subr.mxu0 0.0
        %2086 = vmatpush2.msra.mxu0 0.0
        %2087 = vmatprep.subr.mxu0 0.0
        %2088 = vmatpush2.msra.mxu0 0.0
        %2089 = vmatprep.subr.mxu0 0.0
        %2090 = vmatpush2.msra.mxu0 0.0
        %2091 = vmatprep.mubr.f32.mxu0 0.0
        %2092 = vmatmul.mubr.f32.gmra.mxu0 %v2016
        %v2093 = vpop.f32.mrf.mxu0
        %v2094 = vadd.f32 0.0, %v2093
        %v2095 = vpop.f32.mrf.mxu0
        %v2096 = vadd.f32 0.0, %v2095
        %2097 = vmatprep.mubr.f32.mxu0 0.0
        %2098 = vmatmul.mubr.f32.gmra.mxu0 %v2019
        %v2099 = vpop.f32.mrf.mxu0
        %v2100 = vadd.f32 0.0, %v2099
        %v2101 = vpop.f32.mrf.mxu0
        %v2102 = vadd.f32 0.0, %v2101
        %2103 = vmatprep.mubr.f32.mxu0 0.0
        %2104 = vmatmul.mubr.f32.gmra.mxu0 %v2022
        %v2105 = vpop.f32.mrf.mxu0
        %v2106 = vadd.f32 0.0, %v2105
        %v2107 = vpop.f32.mrf.mxu0
        %v2108 = vadd.f32 0.0, %v2107
        %2109 = vmatprep.mubr.f32.mxu0 0.0
        %2110 = vmatmul.mubr.f32.gmra.mxu0 %v2025
        %v2111 = vpop.f32.mrf.mxu0
        %v2112 = vadd.f32 0.0, %v2111
        %v2113 = vpop.f32.mrf.mxu0
        %v2114 = vadd.f32 0.0, %v2113
        %2115 = vdwg.mxu0
        %v2117 = vsel %vm210, %v2007, 0
        %v2120 = vsel %vm210, %v2008, 0
        %v2123 = vsel %vm210, %v2009, 0
        %v2126 = vsel %vm210, %v2010, 0
        %2128 = vmatprep.subr.mxu0 0.0
        %2129 = vmatpush1.msra.mxu0 0.0
        %2130 = vmatprep.subr.mxu0 0.0
        %2131 = vmatpush1.msra.mxu0 0.0
        %2132 = vmatprep.subr.mxu0 0.0
        %2133 = vmatpush1.msra.mxu0 0.0
        %2134 = vmatprep.subr.mxu0 0.0
        %2135 = vmatpush1.msra.mxu0 0.0
        %2136 = vmatprep.subr.mxu0 0.0
        %2137 = vmatpush1.msra.mxu0 0.0
        %2138 = vmatprep.subr.mxu0 0.0
        %2139 = vmatpush1.msra.mxu0 0.0
        %2140 = vmatprep.subr.mxu0 0.0
        %2141 = vmatpush1.msra.mxu0 0.0
        %2142 = vmatprep.subr.mxu0 0.0
        %2143 = vmatpush1.msra.mxu0 0.0
        %2144 = vmatprep.subr.mxu0 0.0
        %2145 = vmatpush1.msra.mxu0 0.0
        %2146 = vmatprep.subr.mxu0 0.0
        %2147 = vmatpush1.msra.mxu0 0.0
        %2148 = vmatprep.subr.mxu0 0.0
        %2149 = vmatpush1.msra.mxu0 0.0
        %2150 = vmatprep.subr.mxu0 0.0
        %2151 = vmatpush1.msra.mxu0 0.0
        %2152 = vmatprep.subr.mxu0 0.0
        %2153 = vmatpush1.msra.mxu0 0.0
        %2154 = vmatprep.subr.mxu0 0.0
        %2155 = vmatpush1.msra.mxu0 0.0
        %2156 = vmatprep.subr.mxu0 0.0
        %2157 = vmatpush1.msra.mxu0 0.0
        %2158 = vmatprep.subr.mxu0 %v197
        %2159 = vmatpush1.msra.mxu0 %v196
        %2160 = vmatprep.subr.mxu0 0.0
        %2161 = vmatpush2.msra.mxu0 0.0
        %2162 = vmatprep.subr.mxu0 0.0
        %2163 = vmatpush2.msra.mxu0 0.0
        %2164 = vmatprep.subr.mxu0 0.0
        %2165 = vmatpush2.msra.mxu0 0.0
        %2166 = vmatprep.subr.mxu0 0.0
        %2167 = vmatpush2.msra.mxu0 0.0
        %2168 = vmatprep.subr.mxu0 0.0
        %2169 = vmatpush2.msra.mxu0 0.0
        %2170 = vmatprep.subr.mxu0 0.0
        %2171 = vmatpush2.msra.mxu0 0.0
        %2172 = vmatprep.subr.mxu0 0.0
        %2173 = vmatpush2.msra.mxu0 0.0
        %2174 = vmatprep.subr.mxu0 0.0
        %2175 = vmatpush2.msra.mxu0 0.0
        %2176 = vmatprep.subr.mxu0 0.0
        %2177 = vmatpush2.msra.mxu0 0.0
        %2178 = vmatprep.subr.mxu0 0.0
        %2179 = vmatpush2.msra.mxu0 0.0
        %2180 = vmatprep.subr.mxu0 0.0
        %2181 = vmatpush2.msra.mxu0 0.0
        %2182 = vmatprep.subr.mxu0 0.0
        %2183 = vmatpush2.msra.mxu0 0.0
        %2184 = vmatprep.subr.mxu0 0.0
        %2185 = vmatpush2.msra.mxu0 0.0
        %2186 = vmatprep.subr.mxu0 0.0
        %2187 = vmatpush2.msra.mxu0 0.0
        %2188 = vmatprep.subr.mxu0 0.0
        %2189 = vmatpush2.msra.mxu0 0.0
        %2190 = vmatprep.subr.mxu0 0.0
        %2191 = vmatpush2.msra.mxu0 0.0
        %2192 = vmatprep.mubr.f32.mxu0 0.0
        %2193 = vmatmul.mubr.f32.gmra.mxu0 %v2117
        %v2194 = vpop.f32.mrf.mxu0
        %v2195 = vadd.f32 0.0, %v2194
        %v2196 = vpop.f32.mrf.mxu0
        %v2197 = vadd.f32 0.0, %v2196
        %2198 = vmatprep.mubr.f32.mxu0 0.0
        %2199 = vmatmul.mubr.f32.gmra.mxu0 %v2120
        %v2200 = vpop.f32.mrf.mxu0
        %v2201 = vadd.f32 0.0, %v2200
        %v2202 = vpop.f32.mrf.mxu0
        %v2203 = vadd.f32 0.0, %v2202
        %2204 = vmatprep.mubr.f32.mxu0 0.0
        %2205 = vmatmul.mubr.f32.gmra.mxu0 %v2123
        %v2206 = vpop.f32.mrf.mxu0
        %v2207 = vadd.f32 0.0, %v2206
        %v2208 = vpop.f32.mrf.mxu0
        %v2209 = vadd.f32 0.0, %v2208
        %2210 = vmatprep.mubr.f32.mxu0 0.0
        %2211 = vmatmul.mubr.f32.gmra.mxu0 %v2126
        %v2212 = vpop.f32.mrf.mxu0
        %v2213 = vadd.f32 0.0, %v2212
        %v2214 = vpop.f32.mrf.mxu0
        %v2215 = vadd.f32 0.0, %v2214
        %2216 = vdwg.mxu0
        %v2218 = vsel %vm210, %v2011, 0
        %v2221 = vsel %vm210, %v2012, 0
        %v2224 = vsel %vm210, %v2013, 0
        %v2227 = vsel %vm210, %v2014, 0
        %2229 = vmatprep.subr.mxu0 0.0
        %2230 = vmatpush1.msra.mxu0 0.0
        %2231 = vmatprep.subr.mxu0 0.0
        %2232 = vmatpush1.msra.mxu0 0.0
        %2233 = vmatprep.subr.mxu0 0.0
        %2234 = vmatpush1.msra.mxu0 0.0
        %2235 = vmatprep.subr.mxu0 0.0
        %2236 = vmatpush1.msra.mxu0 0.0
        %2237 = vmatprep.subr.mxu0 0.0
        %2238 = vmatpush1.msra.mxu0 0.0
        %2239 = vmatprep.subr.mxu0 0.0
        %2240 = vmatpush1.msra.mxu0 0.0
        %2241 = vmatprep.subr.mxu0 0.0
        %2242 = vmatpush1.msra.mxu0 0.0
        %2243 = vmatprep.subr.mxu0 0.0
        %2244 = vmatpush1.msra.mxu0 0.0
        %2245 = vmatprep.subr.mxu0 0.0
        %2246 = vmatpush1.msra.mxu0 0.0
        %2247 = vmatprep.subr.mxu0 0.0
        %2248 = vmatpush1.msra.mxu0 0.0
        %2249 = vmatprep.subr.mxu0 0.0
        %2250 = vmatpush1.msra.mxu0 0.0
        %2251 = vmatprep.subr.mxu0 0.0
        %2252 = vmatpush1.msra.mxu0 0.0
        %2253 = vmatprep.subr.mxu0 0.0
        %2254 = vmatpush1.msra.mxu0 0.0
        %2255 = vmatprep.subr.mxu0 0.0
        %2256 = vmatpush1.msra.mxu0 0.0
        %2257 = vmatprep.subr.mxu0 0.0
        %2258 = vmatpush1.msra.mxu0 0.0
        %2259 = vmatprep.subr.mxu0 %v197
        %2260 = vmatpush1.msra.mxu0 %v196
        %2261 = vmatprep.subr.mxu0 0.0
        %2262 = vmatpush2.msra.mxu0 0.0
        %2263 = vmatprep.subr.mxu0 0.0
        %2264 = vmatpush2.msra.mxu0 0.0
        %2265 = vmatprep.subr.mxu0 0.0
        %2266 = vmatpush2.msra.mxu0 0.0
        %2267 = vmatprep.subr.mxu0 0.0
        %2268 = vmatpush2.msra.mxu0 0.0
        %2269 = vmatprep.subr.mxu0 0.0
        %2270 = vmatpush2.msra.mxu0 0.0
        %2271 = vmatprep.subr.mxu0 0.0
        %2272 = vmatpush2.msra.mxu0 0.0
        %2273 = vmatprep.subr.mxu0 0.0
        %2274 = vmatpush2.msra.mxu0 0.0
        %2275 = vmatprep.subr.mxu0 0.0
        %2276 = vmatpush2.msra.mxu0 0.0
        %2277 = vmatprep.subr.mxu0 0.0
        %2278 = vmatpush2.msra.mxu0 0.0
        %2279 = vmatprep.subr.mxu0 0.0
        %2280 = vmatpush2.msra.mxu0 0.0
        %2281 = vmatprep.subr.mxu0 0.0
        %2282 = vmatpush2.msra.mxu0 0.0
        %2283 = vmatprep.subr.mxu0 0.0
        %2284 = vmatpush2.msra.mxu0 0.0
        %2285 = vmatprep.subr.mxu0 0.0
        %2286 = vmatpush2.msra.mxu0 0.0
        %2287 = vmatprep.subr.mxu0 0.0
        %2288 = vmatpush2.msra.mxu0 0.0
        %2289 = vmatprep.subr.mxu0 0.0
        %2290 = vmatpush2.msra.mxu0 0.0
        %2291 = vmatprep.subr.mxu0 0.0
        %2292 = vmatpush2.msra.mxu0 0.0
        %2293 = vmatprep.mubr.f32.mxu0 0.0
        %2294 = vmatmul.mubr.f32.gmra.mxu0 %v2218
        %v2295 = vpop.f32.mrf.mxu0
        %v2296 = vadd.f32 0.0, %v2295
        %v2297 = vpop.f32.mrf.mxu0
        %v2298 = vadd.f32 0.0, %v2297
        %2299 = vmatprep.mubr.f32.mxu0 0.0
        %2300 = vmatmul.mubr.f32.gmra.mxu0 %v2221
        %v2301 = vpop.f32.mrf.mxu0
        %v2302 = vadd.f32 0.0, %v2301
        %v2303 = vpop.f32.mrf.mxu0
        %v2304 = vadd.f32 0.0, %v2303
        %2305 = vmatprep.mubr.f32.mxu0 0.0
        %2306 = vmatmul.mubr.f32.gmra.mxu0 %v2224
        %v2307 = vpop.f32.mrf.mxu0
        %v2308 = vadd.f32 0.0, %v2307
        %v2309 = vpop.f32.mrf.mxu0
        %v2310 = vadd.f32 0.0, %v2309
        %2311 = vmatprep.mubr.f32.mxu0 0.0
        %2312 = vmatmul.mubr.f32.gmra.mxu0 %v2227
        %v2313 = vpop.f32.mrf.mxu0
        %v2314 = vadd.f32 0.0, %v2313
        %v2315 = vpop.f32.mrf.mxu0
        %v2316 = vadd.f32 0.0, %v2315
        %2317 = vdwg.mxu0
        %v2318 = vmax.f32 %v2195, %v2197
        %2319 = vmax.xlane.f32.xlu0 %v2318
        %v2320 = vpop.xlane.xlu0 %2319
        %v2321 = vmax.f32 %v2201, %v2203
        %2322 = vmax.xlane.f32.xlu0 %v2321
        %v2323 = vpop.xlane.xlu0 %2322
        %v2324 = vmax.f32 %v2207, %v2209
        %2325 = vmax.xlane.f32.xlu0 %v2324
        %v2326 = vpop.xlane.xlu0 %2325
        %v2327 = vmax.f32 %v2213, %v2215
        %2328 = vmax.xlane.f32.xlu0 %v2327
        %v2329 = vpop.xlane.xlu0 %2328
        %v2330 = vsub.f32 %v2195, %v2320
        %v2331 = vsub.f32 %v2197, %v2320
        %v2332 = vsub.f32 %v2201, %v2323
        %v2333 = vsub.f32 %v2203, %v2323
        %v2334 = vsub.f32 %v2207, %v2326
        %v2335 = vsub.f32 %v2209, %v2326
        %v2336 = vsub.f32 %v2213, %v2329
        %v2337 = vsub.f32 %v2215, %v2329
        %v2338 = vmul.f32 %v2330, 1.442695
        %v2339 = vpow.pop %v2338
        %v2340 = vmul.f32 %v2331, 1.442695
        %v2341 = vpow.pop %v2340
        %v2342 = vmul.f32 %v2332, 1.442695
        %v2343 = vpow.pop %v2342
        %v2344 = vmul.f32 %v2333, 1.442695
        %v2345 = vpow.pop %v2344
        %v2346 = vmul.f32 %v2334, 1.442695
        %v2347 = vpow.pop %v2346
        %v2348 = vmul.f32 %v2335, 1.442695
        %v2349 = vpow.pop %v2348
        %v2350 = vmul.f32 %v2336, 1.442695
        %v2351 = vpow.pop %v2350
        %v2352 = vmul.f32 %v2337, 1.442695
        %v2353 = vpow.pop %v2352
        %v2354 = vadd.f32 %v2339, %v2341
        %2355 = vadd.xlane.f32.xlu0 %v2354
        %v2356 = vpop.xlane.xlu0 %2355
        %v2357 = vadd.f32 %v2343, %v2345
        %2358 = vadd.xlane.f32.xlu0 %v2357
        %v2359 = vpop.xlane.xlu0 %2358
        %v2360 = vadd.f32 %v2347, %v2349
        %2361 = vadd.xlane.f32.xlu0 %v2360
        %v2362 = vpop.xlane.xlu0 %2361
        %v2363 = vadd.f32 %v2351, %v2353
        %2364 = vadd.xlane.f32.xlu0 %v2363
        %v2365 = vpop.xlane.xlu0 %2364
        %v2366 = vrcp.pop %v2356
        %v2367 = vmul.f32 %v2339, %v2366
        %v2368 = vmul.f32 %v2341, %v2366
        %v2369 = vrcp.pop %v2359
        %v2370 = vmul.f32 %v2343, %v2369
        %v2371 = vmul.f32 %v2345, %v2369
        %v2372 = vrcp.pop %v2362
        %v2373 = vmul.f32 %v2347, %v2372
        %v2374 = vmul.f32 %v2349, %v2372
        %v2375 = vrcp.pop %v2365
        %v2376 = vmul.f32 %v2351, %v2375
        %v2377 = vmul.f32 %v2353, %v2375
        %2378 = vmatprep.subr.mxu0 0.0
        %2379 = vmatpush1.xpose.msra.mxu0 0.0
        %2380 = vmatprep.subr.mxu0 0.0
        %2381 = vmatpush1.xpose.msra.mxu0 0.0
        %2382 = vmatprep.subr.mxu0 0.0
        %2383 = vmatpush1.xpose.msra.mxu0 0.0
        %2384 = vmatprep.subr.mxu0 0.0
        %2385 = vmatpush1.xpose.msra.mxu0 0.0
        %2386 = vmatprep.subr.mxu0 0.0
        %2387 = vmatpush1.xpose.msra.mxu0 0.0
        %2388 = vmatprep.subr.mxu0 0.0
        %2389 = vmatpush1.xpose.msra.mxu0 0.0
        %2390 = vmatprep.subr.mxu0 0.0
        %2391 = vmatpush1.xpose.msra.mxu0 0.0
        %2392 = vmatprep.subr.mxu0 0.0
        %2393 = vmatpush1.xpose.msra.mxu0 0.0
        %2394 = vmatprep.subr.mxu0 0.0
        %2395 = vmatpush1.xpose.msra.mxu0 0.0
        %2396 = vmatprep.subr.mxu0 0.0
        %2397 = vmatpush1.xpose.msra.mxu0 0.0
        %2398 = vmatprep.subr.mxu0 0.0
        %2399 = vmatpush1.xpose.msra.mxu0 0.0
        %2400 = vmatprep.subr.mxu0 0.0
        %2401 = vmatpush1.xpose.msra.mxu0 0.0
        %2402 = vmatprep.subr.mxu0 %v2316
        %2403 = vmatpush1.xpose.msra.mxu0 %v2314
        %2404 = vmatprep.subr.mxu0 %v2310
        %2405 = vmatpush1.xpose.msra.mxu0 %v2308
        %2406 = vmatprep.subr.mxu0 %v2304
        %2407 = vmatpush1.xpose.msra.mxu0 %v2302
        %2408 = vmatprep.subr.mxu0 %v2298
        %2409 = vmatpush1.xpose.msra.mxu0 %v2296
        %2410 = vmatprep.subr.mxu0 0.0
        %2411 = vmatpush2.xpose.msra.mxu0 0.0
        %2412 = vmatprep.subr.mxu0 0.0
        %2413 = vmatpush2.xpose.msra.mxu0 0.0
        %2414 = vmatprep.subr.mxu0 0.0
        %2415 = vmatpush2.xpose.msra.mxu0 0.0
        %2416 = vmatprep.subr.mxu0 0.0
        %2417 = vmatpush2.xpose.msra.mxu0 0.0
        %2418 = vmatprep.subr.mxu0 0.0
        %2419 = vmatpush2.xpose.msra.mxu0 0.0
        %2420 = vmatprep.subr.mxu0 0.0
        %2421 = vmatpush2.xpose.msra.mxu0 0.0
        %2422 = vmatprep.subr.mxu0 0.0
        %2423 = vmatpush2.xpose.msra.mxu0 0.0
        %2424 = vmatprep.subr.mxu0 0.0
        %2425 = vmatpush2.xpose.msra.mxu0 0.0
        %2426 = vmatprep.subr.mxu0 0.0
        %2427 = vmatpush2.xpose.msra.mxu0 0.0
        %2428 = vmatprep.subr.mxu0 0.0
        %2429 = vmatpush2.xpose.msra.mxu0 0.0
        %2430 = vmatprep.subr.mxu0 0.0
        %2431 = vmatpush2.xpose.msra.mxu0 0.0
        %2432 = vmatprep.subr.mxu0 0.0
        %2433 = vmatpush2.xpose.msra.mxu0 0.0
        %2434 = vmatprep.subr.mxu0 0.0
        %2435 = vmatpush2.xpose.msra.mxu0 0.0
        %2436 = vmatprep.subr.mxu0 0.0
        %2437 = vmatpush2.xpose.msra.mxu0 0.0
        %2438 = vmatprep.subr.mxu0 0.0
        %2439 = vmatpush2.xpose.msra.mxu0 0.0
        %2440 = vmatprep.subr.mxu0 0.0
        %2441 = vmatpush2.xpose.msra.mxu0 0.0
        %2442 = vmatprep.mubr.f32.mxu0 %v2368
        %2443 = vmatmul.mubr.f32.gmra.mxu0 %v2367
        %v2444 = vpop.f32.mrf.mxu0
        %v2445 = vadd.f32 0.0, %v2444
        %v2446 = vpop.f32.mrf.mxu0
        %2447 = vmatprep.mubr.f32.mxu0 %v2371
        %2448 = vmatmul.mubr.f32.gmra.mxu0 %v2370
        %v2449 = vpop.f32.mrf.mxu0
        %v2450 = vadd.f32 0.0, %v2449
        %v2451 = vpop.f32.mrf.mxu0
        %2452 = vmatprep.mubr.f32.mxu0 %v2374
        %2453 = vmatmul.mubr.f32.gmra.mxu0 %v2373
        %v2454 = vpop.f32.mrf.mxu0
        %v2455 = vadd.f32 0.0, %v2454
        %v2456 = vpop.f32.mrf.mxu0
        %2457 = vmatprep.mubr.f32.mxu0 %v2377
        %2458 = vmatmul.mubr.f32.gmra.mxu0 %v2376
        %v2459 = vpop.f32.mrf.mxu0
        %v2460 = vadd.f32 0.0, %v2459
        %v2461 = vpop.f32.mrf.mxu0
        %2462 = vdwg.mxu0
        %2463 = vxpose.xlu0.b32.start [1/16] %v2445, 128
        %2464 = vxpose.xlu0.b32.cont [2/16] %v2450, 128
        %2465 = vxpose.xlu0.b32.cont [3/16] %v2455, 128
        %2466 = vxpose.xlu0.b32.cont [4/16] %v2460, 128
        %2467 = vxpose.xlu0.b32.cont [5/16] 0.0, 128
        %2468 = vxpose.xlu0.b32.cont [6/16] 0.0, 128
        %2469 = vxpose.xlu0.b32.cont [7/16] 0.0, 128
        %2470 = vxpose.xlu0.b32.cont [8/16] 0.0, 128
        %2471 = vxpose.xlu0.b32.cont [9/16] 0.0, 128
        %2472 = vxpose.xlu0.b32.cont [10/16] 0.0, 128
        %2473 = vxpose.xlu0.b32.cont [11/16] 0.0, 128
        %2474 = vxpose.xlu0.b32.cont [12/16] 0.0, 128
        %2475 = vxpose.xlu0.b32.cont [13/16] 0.0, 128
        %2476 = vxpose.xlu0.b32.cont [14/16] 0.0, 128
        %2477 = vxpose.xlu0.b32.cont [15/16] 0.0, 128
        %2478 = vxpose.xlu0.b32.end [16/16] 0.0, 128
        %v2479 = vpop.trf.xlu0
        %v2480 = vpop.trf.xlu0
        %v2481 = vpop.trf.xlu0
        %v2482 = vpop.trf.xlu0
        %v2483 = vpop.trf.xlu0
        %v2484 = vpop.trf.xlu0
        %v2485 = vpop.trf.xlu0
        %v2486 = vpop.trf.xlu0
        %v2487 = vpop.trf.xlu0
        %v2488 = vpop.trf.xlu0
        %v2489 = vpop.trf.xlu0
        %v2490 = vpop.trf.xlu0
        %v2491 = vpop.trf.xlu0
        %v2492 = vpop.trf.xlu0
        %v2493 = vpop.trf.xlu0
        %v2494 = vpop.trf.xlu0
        %v2496 = vsel %vm691, %v2479, 0
        %v2499 = vsel %vm691, %v2480, 0
        %v2502 = vsel %vm691, %v2481, 0
        %v2505 = vsel %vm691, %v2482, 0
        %2507 = vmatprep.subr.mxu0 0.0
        %2508 = vmatpush1.msra.mxu0 0.0
        %2509 = vmatprep.subr.mxu0 0.0
        %2510 = vmatpush1.msra.mxu0 0.0
        %2511 = vmatprep.subr.mxu0 0.0
        %2512 = vmatpush1.msra.mxu0 0.0
        %2513 = vmatprep.subr.mxu0 0.0
        %2514 = vmatpush1.msra.mxu0 0.0
        %2515 = vmatprep.subr.mxu0 0.0
        %2516 = vmatpush1.msra.mxu0 0.0
        %2517 = vmatprep.subr.mxu0 0.0
        %2518 = vmatpush1.msra.mxu0 0.0
        %2519 = vmatprep.subr.mxu0 0.0
        %2520 = vmatpush1.msra.mxu0 0.0
        %2521 = vmatprep.subr.mxu0 0.0
        %2522 = vmatpush1.msra.mxu0 0.0
        %2523 = vmatprep.subr.mxu0 0.0
        %2524 = vmatpush1.msra.mxu0 0.0
        %2525 = vmatprep.subr.mxu0 0.0
        %2526 = vmatpush1.msra.mxu0 0.0
        %2527 = vmatprep.subr.mxu0 0.0
        %2528 = vmatpush1.msra.mxu0 0.0
        %2529 = vmatprep.subr.mxu0 0.0
        %2530 = vmatpush1.msra.mxu0 0.0
        %2531 = vmatprep.subr.mxu0 %v2114
        %2532 = vmatpush1.msra.mxu0 %v2112
        %2533 = vmatprep.subr.mxu0 %v2108
        %2534 = vmatpush1.msra.mxu0 %v2106
        %2535 = vmatprep.subr.mxu0 %v2102
        %2536 = vmatpush1.msra.mxu0 %v2100
        %2537 = vmatprep.subr.mxu0 %v2096
        %2538 = vmatpush1.msra.mxu0 %v2094
        %2539 = vmatprep.subr.mxu0 0.0
        %2540 = vmatpush2.msra.mxu0 0.0
        %2541 = vmatprep.subr.mxu0 0.0
        %2542 = vmatpush2.msra.mxu0 0.0
        %2543 = vmatprep.subr.mxu0 0.0
        %2544 = vmatpush2.msra.mxu0 0.0
        %2545 = vmatprep.subr.mxu0 0.0
        %2546 = vmatpush2.msra.mxu0 0.0
        %2547 = vmatprep.subr.mxu0 0.0
        %2548 = vmatpush2.msra.mxu0 0.0
        %2549 = vmatprep.subr.mxu0 0.0
        %2550 = vmatpush2.msra.mxu0 0.0
        %2551 = vmatprep.subr.mxu0 0.0
        %2552 = vmatpush2.msra.mxu0 0.0
        %2553 = vmatprep.subr.mxu0 0.0
        %2554 = vmatpush2.msra.mxu0 0.0
        %2555 = vmatprep.subr.mxu0 0.0
        %2556 = vmatpush2.msra.mxu0 0.0
        %2557 = vmatprep.subr.mxu0 0.0
        %2558 = vmatpush2.msra.mxu0 0.0
        %2559 = vmatprep.subr.mxu0 0.0
        %2560 = vmatpush2.msra.mxu0 0.0
        %2561 = vmatprep.subr.mxu0 0.0
        %2562 = vmatpush2.msra.mxu0 0.0
        %2563 = vmatprep.subr.mxu0 0.0
        %2564 = vmatpush2.msra.mxu0 0.0
        %2565 = vmatprep.subr.mxu0 0.0
        %2566 = vmatpush2.msra.mxu0 0.0
        %2567 = vmatprep.subr.mxu0 0.0
        %2568 = vmatpush2.msra.mxu0 0.0
        %2569 = vmatprep.subr.mxu0 0.0
        %2570 = vmatpush2.msra.mxu0 0.0
        %2571 = vmatprep.mubr.f32.mxu0 0.0
        %2572 = vmatmul.mubr.f32.gmra.mxu0 %v2496
        %v2573 = vpop.f32.mrf.mxu0
        %v2574 = vadd.f32 0.0, %v2573
        %v2575 = vpop.f32.mrf.mxu0
        %v2576 = vadd.f32 0.0, %v2575
        %2577 = vmatprep.mubr.f32.mxu0 0.0
        %2578 = vmatmul.mubr.f32.gmra.mxu0 %v2499
        %v2579 = vpop.f32.mrf.mxu0
        %v2580 = vadd.f32 0.0, %v2579
        %v2581 = vpop.f32.mrf.mxu0
        %v2582 = vadd.f32 0.0, %v2581
        %2583 = vmatprep.mubr.f32.mxu0 0.0
        %2584 = vmatmul.mubr.f32.gmra.mxu0 %v2502
        %v2585 = vpop.f32.mrf.mxu0
        %v2586 = vadd.f32 0.0, %v2585
        %v2587 = vpop.f32.mrf.mxu0
        %v2588 = vadd.f32 0.0, %v2587
        %2589 = vmatprep.mubr.f32.mxu0 0.0
        %2590 = vmatmul.mubr.f32.gmra.mxu0 %v2505
        %v2591 = vpop.f32.mrf.mxu0
        %v2592 = vadd.f32 0.0, %v2591
        %v2593 = vpop.f32.mrf.mxu0
        %v2594 = vadd.f32 0.0, %v2593
        %2595 = vdwg.mxu0
        %2596 = vst [vmem:[#allocation2 + $0xc0] sm:$0xff] %v2574
        %2597 = vst [vmem:[#allocation2 + $0xc8] sm:$0xff] %v2576
        %2598 = vst [vmem:[#allocation2 + $0xd0] sm:$0xff] %v2580
        %2599 = vst [vmem:[#allocation2 + $0xd8] sm:$0xff] %v2582
        %2600 = vst [vmem:[#allocation2 + $0xe0] sm:$0xff] %v2586
        %2601 = vst [vmem:[#allocation2 + $0xe8] sm:$0xff] %v2588
        %2602 = vst [vmem:[#allocation2 + $0xf0] sm:$0xff] %v2592
        %2603 = vst [vmem:[#allocation2 + $0xf8] sm:$0xff] %v2594
        %v2604 = vld [vmem:[%s2] sm:$0xff]
        %v2605 = vld [vmem:[#allocation2] sm:$0xff]
        %v2606 = vld [vmem:[#allocation2 + $0x8] sm:$0xff]
        %v2607 = vld [vmem:[#allocation2 + $0x10] sm:$0xff]
        %v2608 = vld [vmem:[#allocation2 + $0x18] sm:$0xff]
        %v2609 = vld [vmem:[#allocation2 + $0x20] sm:$0xff]
        %v2610 = vld [vmem:[#allocation2 + $0x28] sm:$0xff]
        %v2611 = vld [vmem:[#allocation2 + $0x30] sm:$0xff]
        %v2612 = vld [vmem:[#allocation2 + $0x38] sm:$0xff]
        %v2613 = vld [vmem:[#allocation2 + $0x40] sm:$0xff]
        %v2614 = vld [vmem:[#allocation2 + $0x48] sm:$0xff]
        %v2615 = vld [vmem:[#allocation2 + $0x50] sm:$0xff]
        %v2616 = vld [vmem:[#allocation2 + $0x58] sm:$0xff]
        %v2617 = vld [vmem:[#allocation2 + $0x60] sm:$0xff]
        %v2618 = vld [vmem:[#allocation2 + $0x68] sm:$0xff]
        %v2619 = vld [vmem:[#allocation2 + $0x70] sm:$0xff]
        %v2620 = vld [vmem:[#allocation2 + $0x78] sm:$0xff]
        %v2621 = vld [vmem:[#allocation2 + $0x80] sm:$0xff]
        %v2622 = vld [vmem:[#allocation2 + $0x88] sm:$0xff]
        %v2623 = vld [vmem:[#allocation2 + $0x90] sm:$0xff]
        %v2624 = vld [vmem:[#allocation2 + $0x98] sm:$0xff]
        %v2625 = vld [vmem:[#allocation2 + $0xa0] sm:$0xff]
        %v2626 = vld [vmem:[#allocation2 + $0xa8] sm:$0xff]
        %v2627 = vld [vmem:[#allocation2 + $0xb0] sm:$0xff]
        %v2628 = vld [vmem:[#allocation2 + $0xb8] sm:$0xff]
        %v2629 = vld [vmem:[#allocation2 + $0xc0] sm:$0xff]
        %v2630 = vld [vmem:[#allocation2 + $0xc8] sm:$0xff]
        %v2631 = vld [vmem:[#allocation2 + $0xd0] sm:$0xff]
        %v2632 = vld [vmem:[#allocation2 + $0xd8] sm:$0xff]
        %v2633 = vld [vmem:[#allocation2 + $0xe0] sm:$0xff]
        %v2634 = vld [vmem:[#allocation2 + $0xe8] sm:$0xff]
        %v2635 = vld [vmem:[#allocation2 + $0xf0] sm:$0xff]
        %v2636 = vld [vmem:[#allocation2 + $0xf8] sm:$0xff]
        %v2637 = vld [vmem:[%s3] sm:$0xff]
        %2639 = vset.pattern.permute.xlu0 0
        %2640 = vperm.xlu0 %2639, %v2637
        %v2641 = vpop.permute.xlu0 %2640
        %2643 = vmatprep.subr.mxu0 %v2636
        %2644 = vmatpush1.msra.mxu0 %v2635
        %2645 = vmatprep.subr.mxu0 %v2634
        %2646 = vmatpush1.msra.mxu0 %v2633
        %2647 = vmatprep.subr.mxu0 %v2632
        %2648 = vmatpush1.msra.mxu0 %v2631
        %2649 = vmatprep.subr.mxu0 %v2630
        %2650 = vmatpush1.msra.mxu0 %v2629
        %2651 = vmatprep.subr.mxu0 %v2628
        %2652 = vmatpush1.msra.mxu0 %v2627
        %2653 = vmatprep.subr.mxu0 %v2626
        %2654 = vmatpush1.msra.mxu0 %v2625
        %2655 = vmatprep.subr.mxu0 %v2624
        %2656 = vmatpush1.msra.mxu0 %v2623
        %2657 = vmatprep.subr.mxu0 %v2622
        %2658 = vmatpush1.msra.mxu0 %v2621
        %2659 = vmatprep.subr.mxu0 %v2620
        %2660 = vmatpush1.msra.mxu0 %v2619
        %2661 = vmatprep.subr.mxu0 %v2618
        %2662 = vmatpush1.msra.mxu0 %v2617
        %2663 = vmatprep.subr.mxu0 %v2616
        %2664 = vmatpush1.msra.mxu0 %v2615
        %2665 = vmatprep.subr.mxu0 %v2614
        %2666 = vmatpush1.msra.mxu0 %v2613
        %2667 = vmatprep.subr.mxu0 %v2612
        %2668 = vmatpush1.msra.mxu0 %v2611
        %2669 = vmatprep.subr.mxu0 %v2610
        %2670 = vmatpush1.msra.mxu0 %v2609
        %2671 = vmatprep.subr.mxu0 %v2608
        %2672 = vmatpush1.msra.mxu0 %v2607
        %2673 = vmatprep.subr.mxu0 %v2606
        %2674 = vmatpush1.msra.mxu0 %v2605
        %2675 = vmatprep.subr.mxu0 0.0
        %2676 = vmatpush2.msra.mxu0 0.0
        %2677 = vmatprep.subr.mxu0 0.0
        %2678 = vmatpush2.msra.mxu0 0.0
        %2679 = vmatprep.subr.mxu0 0.0
        %2680 = vmatpush2.msra.mxu0 0.0
        %2681 = vmatprep.subr.mxu0 0.0
        %2682 = vmatpush2.msra.mxu0 0.0
        %2683 = vmatprep.subr.mxu0 0.0
        %2684 = vmatpush2.msra.mxu0 0.0
        %2685 = vmatprep.subr.mxu0 0.0
        %2686 = vmatpush2.msra.mxu0 0.0
        %2687 = vmatprep.subr.mxu0 0.0
        %2688 = vmatpush2.msra.mxu0 0.0
        %2689 = vmatprep.subr.mxu0 0.0
        %2690 = vmatpush2.msra.mxu0 0.0
        %2691 = vmatprep.subr.mxu0 0.0
        %2692 = vmatpush2.msra.mxu0 0.0
        %2693 = vmatprep.subr.mxu0 0.0
        %2694 = vmatpush2.msra.mxu0 0.0
        %2695 = vmatprep.subr.mxu0 0.0
        %2696 = vmatpush2.msra.mxu0 0.0
        %2697 = vmatprep.subr.mxu0 0.0
        %2698 = vmatpush2.msra.mxu0 0.0
        %2699 = vmatprep.subr.mxu0 0.0
        %2700 = vmatpush2.msra.mxu0 0.0
        %2701 = vmatprep.subr.mxu0 0.0
        %2702 = vmatpush2.msra.mxu0 0.0
        %2703 = vmatprep.subr.mxu0 0.0
        %2704 = vmatpush2.msra.mxu0 0.0
        %2705 = vmatprep.subr.mxu0 0.0
        %2706 = vmatpush2.msra.mxu0 0.0
        %2707 = vmatprep.mubr.f32.mxu0 0.0
        %2708 = vmatmul.mubr.f32.gmra.mxu0 %v2604
        %v2709 = vpop.f32.mrf.mxu0
        %v2710 = vadd.f32 %v2641, %v2709
        %v2711 = vpop.f32.mrf.mxu0
        %v2712 = vadd.f32 %v2641, %v2711
        %2713 = vdwg.mxu0
        %2714 = vst [vmem:[%s190] sm:$0xff] %v2710
        %2715 = vst [vmem:[%s190 + $0x8] sm:$0xff] %v2712
        %s2716 = sand.u32 %s115, 1
        %s2717 = scalar_lea.sflag [#allocation4], %s2716
        %s2718 = sand.u32 %s115, 1
        %s2719 = smul.addr %s2718, 16
        %s2720 = scalar_lea.vmem [#allocation3], %s2719
        // Predicated region
        $region37: #{tpu_custom_call.1} parent=35 // pred_check
          %p2721 = pneg %p125
        $region38: #{tpu_custom_call.1} parent=35 // pred_check_branch
          %2723 = sbr.rel (%p2721) target = $region40
        $region39: #{tpu_custom_call.1} parent=35 // pred_region
          %s2725 = ssub.s32 256, 256
          %2726 = vsyncadd %s2717, %s2725
          %s2727 = smul.addr %s18, 2
          %s2728 = smul.addr %s2727, 128
          %s2729 = scalar_lea.hbm %s4, %s2728
          %s2731 = sshll.u32 %s2720, 4
          %s2732 = int_to_ptr.vmem [resolvable:$true] %s2731
          %2734 = dma.vmem_to_hbm [thread:$0]  %s2732, 256, %s2729, %s2717
        $region40: #{tpu_custom_call.1} parent=35 // pred_fallthru
          _
      $region36: #{tpu_custom_call.1} parent=5 // pred_fallthru
        _
      %p2735 = scmp.le.s32.totalorder 2, %s13
      // Predicated region
      $region41: #{tpu_custom_call.1} parent=5 // pred_check
        %p2736 = pneg %p2735
      $region42: #{tpu_custom_call.1} parent=5 // pred_check_branch
        %2738 = sbr.rel (%p2736) target = $region44
      $region43: #{tpu_custom_call.1} parent=5 // pred_region
        %s2739 = ssub.s32 %s13, 2
        // Predicated region
        $region45: #{tpu_custom_call.1} parent=43 // pred_check
          %p2740 = pneg %p131
        $region46: #{tpu_custom_call.1} parent=43 // pred_check_branch
          %2742 = sbr.rel (%p2740) target = $region48
        $region47: #{tpu_custom_call.1} parent=43 // pred_region
          %s2743 = sand.u32 %s116, 1
          %s2744 = scalar_lea.sflag [#allocation4], %s2743
          %s2745 = sand.u32 %s116, 1
          %s2746 = smul.addr %s2745, 16
          %s2747 = scalar_lea.vmem [#allocation3], %s2746
          %2748 = dma.done %s2744, 256
        $region48: #{tpu_custom_call.1} parent=43 // pred_fallthru
          _
      $region44: #{tpu_custom_call.1} parent=5 // pred_fallthru
        _
    $region6: #{tpu_custom_call.1} parent=1 // loop_footer
      %s17 = sadd.s32 1, %s13
    $region7: #{tpu_custom_call.1} parent=1 // loop_footer_branch
      %12 = sbr.rel target = $region3
    $region8: #{tpu_custom_call.1} parent=1 // loop_exit
      _
    %2749 = vsyncpa [#allocation4], 1
    %s2750 = scalar_lea.sflag [#allocation4], 1
    %2751 = vsyncpa %s2750, 1

</llo_original>
